<compile_context>
chip_gen: v7x
topology: tpu7x:2x2x1
jax: 0.10.0
libtpu: 0.0.40
codegen_flags: <defaults>
</compile_context>

<pallas_src>
import math
from functools import partial

import jax
import jax.numpy as jnp
from jax import lax
from jax.experimental import pallas as pl
from jax.experimental.pallas import tpu as pltpu

EPS = 1e-6


def _rmsnorm(x, g):
    # x: (tile, C) f32, g: (1, C) f32
    ms = jnp.mean(x * x, axis=-1, keepdims=True)
    return x * lax.rsqrt(ms + EPS) * g


def _pick_tile(n, cap):
    """Largest divisor of n that is <= cap, preferring multiples of 8."""
    best = None
    for t in range(min(n, cap), 0, -1):
        if n % t == 0:
            if t % 8 == 0 or t == n:
                return t
            if best is None:
                best = t
    return best


def _vmem_limit_bytes():
    # ~85% of physical VMEM, capped at 112 MiB:
    #   v5e/v6e (128 MiB physical) -> ~109 MiB, v7x (64 MiB) -> ~54 MiB.
    try:
        cap = pltpu.get_tpu_info().vmem_capacity_bytes
    except Exception:  # pragma: no cover - conservative fallback
        cap = 64 * 1024 * 1024
    return int(min(cap * 0.85, 112 * 1024 * 1024))


# ------------------ kernel 1: RMSNorm + fused QKV + RoPE ----------------------
def qkv_rope_kernel(x_ref, wqkv_ref, g1_ref, cos_ref, sa_ref, sb_ref, qkv_ref):
    xn = _rmsnorm(x_ref[...], g1_ref[...]).astype(jnp.bfloat16)
    # single fused (tile, C) @ (C, 3C) matmul: [q | k | v]
    y = jnp.dot(xn, wqkv_ref[...], preferred_element_type=jnp.float32)
    n = y.shape[-1]
    # interleaved-pair RoPE via lane rolls (XLU):
    #   out[2i]   = y[2i]*cos_i - y[2i+1]*sin_i
    #   out[2i+1] = y[2i+1]*cos_i + y[2i]*sin_i
    # sa is (-sin) at even lanes / 0 at odd; sb is (+sin) at odd lanes / 0 at
    # even; the v section has cos=1, sa=sb=0; the q section also carries the
    # folded 1/sqrt(head_size) softmax scale.  Wrap/cross-section lanes are
    # always multiplied by zero.
    y_next = pltpu.roll(y, shift=n - 1, axis=1)   # y_next[:, j] = y[:, (j+1) % n]
    y_prev = pltpu.roll(y, shift=1, axis=1)       # y_prev[:, j] = y[:, (j-1) % n]
    qkv_ref[...] = (y * cos_ref[...] + y_next * sa_ref[...]
                    + y_prev * sb_ref[...]).astype(qkv_ref.dtype)


# ------------------ kernel 2: flash-style causal attention --------------------
def flash_attn_kernel(q_ref, k_ref, v_ref, o_ref, m_ref, l_ref, acc_ref, *,
                      q_axis, kv_axis):
    tq, hs = q_ref.shape
    tk = k_ref.shape[0]
    qi = pl.program_id(q_axis)
    ki = pl.program_id(kv_axis)
    nk = pl.num_programs(kv_axis)

    @pl.when(ki == 0)
    def _():
        m_ref[...] = jnp.full((tq, 1), -jnp.inf, jnp.float32)
        l_ref[...] = jnp.zeros((tq, 1), jnp.float32)
        acc_ref[...] = jnp.zeros((tq, hs), jnp.float32)

    # Skip kv tiles that are entirely above the causal diagonal.
    @pl.when(ki * tk <= qi * tq + (tq - 1))
    def _():
        # scores = q @ k.T (q already carries the 1/sqrt(hs) scale)
        s = lax.dot_general(q_ref[...], k_ref[...], (((1,), (1,)), ((), ())),
                            preferred_element_type=jnp.float32)
        rows = qi * tq + lax.broadcasted_iota(jnp.int32, (tq, tk), 0)
        cols = ki * tk + lax.broadcasted_iota(jnp.int32, (tq, tk), 1)
        s = jnp.where(cols <= rows, s, -jnp.inf)

        m_prev = m_ref[...]
        m_new = jnp.maximum(m_prev, jnp.max(s, axis=-1, keepdims=True))
        alpha = jnp.exp(m_prev - m_new)
        p = jnp.exp(s - m_new)
        l_ref[...] = alpha * l_ref[...] + jnp.sum(p, axis=-1, keepdims=True)
        acc_ref[...] = alpha * acc_ref[...] + jnp.dot(
            p.astype(v_ref.dtype), v_ref[...], preferred_element_type=jnp.float32)
        m_ref[...] = m_new

    @pl.when(ki == nk - 1)
    def _():
        o_ref[...] = (acc_ref[...] *
                      pl.reciprocal(l_ref[...], approx=True)).astype(o_ref.dtype)


# --------------- kernel 3: out-proj + residual + RMSNorm + SwiGLU --------------
def out_ffn_kernel(x_ref, attn_ref, wo_ref, w1_ref, w2_ref, w3_ref, g2_ref, o_ref):
    h1 = x_ref[...] + jnp.dot(attn_ref[...], wo_ref[...],
                              preferred_element_type=jnp.float32)
    hn = _rmsnorm(h1, g2_ref[...]).astype(jnp.bfloat16)
    a = jnp.dot(hn, w1_ref[...], preferred_element_type=jnp.float32)
    b = jnp.dot(hn, w3_ref[...], preferred_element_type=jnp.float32)
    ff = (a * jax.nn.sigmoid(a) * b).astype(jnp.bfloat16)     # silu(a) * b
    o_ref[...] = (h1 + jnp.dot(ff, w2_ref[...],
                               preferred_element_type=jnp.float32)).astype(o_ref.dtype)


# --------------------------------- wrapper ------------------------------------
def block_forward(x, params, cos3, sinA3, sinB3, *, n_head,
                  tq_cap=256, ta_cap=512):
    B, T, C = x.shape
    hs = C // n_head
    hidden = params["w1"].shape[1]
    C3 = 3 * C

    tq = _pick_tile(T, tq_cap)      # sequence tile for projection / FFN kernels
    ta = _pick_tile(T, ta_cap)      # attention q/kv tile (shared so causal-skip math is exact)
    nq_a = T // ta
    vlim = _vmem_limit_bytes()

    def cparams(sem):
        return pltpu.CompilerParams(dimension_semantics=sem,
                                    vmem_limit_bytes=vlim)

    x_spec = pl.BlockSpec((None, tq, C), lambda b, i: (b, i, 0))
    rope_spec = pl.BlockSpec((tq, C3), lambda b, i: (i, 0))
    slab_spec = pl.BlockSpec((None, tq, C3), lambda b, i: (b, i, 0))

    # ---- kernel 1: RMSNorm + fused QKV projection + RoPE (rolls) ----
    qkv = pl.pallas_call(
        qkv_rope_kernel,
        grid=(B, T // tq),
        in_specs=[x_spec,
                  pl.BlockSpec((C, C3), lambda b, i: (0, 0)),
                  pl.BlockSpec((1, C), lambda b, i: (0, 0)),
                  rope_spec, rope_spec, rope_spec],
        out_specs=slab_spec,
        out_shape=jax.ShapeDtypeStruct((B, T, C3), jnp.bfloat16),
        compiler_params=cparams(("parallel", "parallel")),
        cost_estimate=pl.CostEstimate(
            flops=2 * B * T * C * C3,
            transcendentals=B * T,
            bytes_accessed=4 * B * T * C + 2 * C * C3 + 3 * 4 * B * T * C3
                           + 2 * B * T * C3),
    )(x, params["wqkv"], params["g1"], cos3, sinA3, sinB3)

    # ---- kernel 2: flash attention with causal tile skipping ----
    attn_flops = 2 * B * n_head * T * T * hs            # ~causal half of dense
    attn_bytes = 2 * B * T * C * (2 + 2 * nq_a)          # q + out + K/V restream
    scratch = [pltpu.VMEM((ta, 1), jnp.float32),
               pltpu.VMEM((ta, 1), jnp.float32),
               pltpu.VMEM((ta, hs), jnp.float32)]

    if hs % 128 == 0 or n_head == 1:
        # direct (B, T, 3C)-slab layout: no head transposes in HBM; q/k/v are
        # addressed by channel-block index (h / n_head+h / 2*n_head+h).
        q_spec = pl.BlockSpec((None, ta, hs), lambda b, h, i, j: (b, i, h))
        k_spec = pl.BlockSpec(
            (None, ta, hs),
            lambda b, h, i, j: (b, jnp.minimum(j, i), n_head + h))
        v_spec = pl.BlockSpec(
            (None, ta, hs),
            lambda b, h, i, j: (b, jnp.minimum(j, i), 2 * n_head + h))
        o_spec = pl.BlockSpec((None, ta, hs), lambda b, h, i, j: (b, i, h))
        attn = pl.pallas_call(
            partial(flash_attn_kernel, q_axis=2, kv_axis=3),
            grid=(B, n_head, nq_a, nq_a),
            in_specs=[q_spec, k_spec, v_spec],
            out_specs=o_spec,
            out_shape=jax.ShapeDtypeStruct((B, T, C), jnp.bfloat16),
            scratch_shapes=scratch,
            compiler_params=cparams(("parallel", "parallel", "parallel",
                                     "arbitrary")),
            cost_estimate=pl.CostEstimate(
                flops=attn_flops,
                transcendentals=B * n_head * T * T // 2,
                bytes_accessed=attn_bytes),
        )(qkv, qkv, qkv)
    else:
        # fallback for head_size not a multiple of 128: head-major layout
        # (wrapper-side XLA transpose), same kernel.
        q = qkv[..., :C]
        k = qkv[..., C:2 * C]
        v = qkv[..., 2 * C:]

        def to_heads(t):
            return t.reshape(B, T, n_head, hs).transpose(0, 2, 1, 3).reshape(
                B * n_head, T, hs)

        qh, kh, vh = to_heads(q), to_heads(k), to_heads(v)
        q_spec = pl.BlockSpec((None, ta, hs), lambda g, i, j: (g, i, 0))
        kv_spec = pl.BlockSpec((None, ta, hs),
                               lambda g, i, j: (g, jnp.minimum(j, i), 0))
        attn_h = pl.pallas_call(
            partial(flash_attn_kernel, q_axis=1, kv_axis=2),
            grid=(B * n_head, nq_a, nq_a),
            in_specs=[q_spec, kv_spec, kv_spec],
            out_specs=q_spec,
            out_shape=jax.ShapeDtypeStruct((B * n_head, T, hs), jnp.bfloat16),
            scratch_shapes=scratch,
            compiler_params=cparams(("parallel", "parallel", "arbitrary")),
            cost_estimate=pl.CostEstimate(
                flops=attn_flops,
                transcendentals=B * n_head * T * T // 2,
                bytes_accessed=attn_bytes),
        )(qh, kh, vh)
        attn = attn_h.reshape(B, n_head, T, hs).transpose(0, 2, 1, 3).reshape(
            B, T, C)

    # ---- kernel 3: out projection + residual + RMSNorm + SwiGLU FFN + residual ----
    out = pl.pallas_call(
        out_ffn_kernel,
        grid=(B, T // tq),
        in_specs=[x_spec, x_spec,
                  pl.BlockSpec((C, C), lambda b, i: (0, 0)),
                  pl.BlockSpec((C, hidden), lambda b, i: (0, 0)),
                  pl.BlockSpec((hidden, C), lambda b, i: (0, 0)),
                  pl.BlockSpec((C, hidden), lambda b, i: (0, 0)),
                  pl.BlockSpec((1, C), lambda b, i: (0, 0))],
        out_specs=x_spec,
        out_shape=jax.ShapeDtypeStruct((B, T, C), x.dtype),
        compiler_params=cparams(("parallel", "parallel")),
        cost_estimate=pl.CostEstimate(
            flops=2 * B * T * (C * C + 3 * C * hidden),
            transcendentals=B * T * hidden + B * T,
            bytes_accessed=2 * 4 * B * T * C + 2 * B * T * C
                           + 2 * (C * C + 3 * C * hidden)),
    )(x, attn, params["wo"], params["w1"], params["w2"], params["w3"],
      params["g2"])
    return out


# ---------------- pure-JAX reference (mirrors the PyTorch module) --------------
def reference_block(x, p, cos_half, sin_half, *, n_head):
    B, T, C = x.shape
    hs = C // n_head

    def rms(v, g):
        return v * lax.rsqrt(jnp.mean(v * v, -1, keepdims=True) + EPS) * g

    xn = rms(x, p["g1"])
    q = (xn @ p["wq"]).reshape(B, T, n_head, hs)
    k = (xn @ p["wk"]).reshape(B, T, n_head, hs)
    v = (xn @ p["wv"]).reshape(B, T, n_head, hs)

    def rope(t):
        te, to = t[..., 0::2], t[..., 1::2]
        c = cos_half[None, :, None, :]
        s = sin_half[None, :, None, :]
        oe = te * c - to * s
        oo = te * s + to * c
        return jnp.stack([oe, oo], axis=-1).reshape(t.shape)

    q, k = rope(q), rope(k)
    q = q.transpose(0, 2, 1, 3)
    k = k.transpose(0, 2, 1, 3)
    v = v.transpose(0, 2, 1, 3)
    att = (q @ jnp.swapaxes(k, -1, -2)) / math.sqrt(hs)
    mask = jnp.tril(jnp.ones((T, T), bool))
    att = jnp.where(mask, att, -jnp.inf)
    att = jax.nn.softmax(att, axis=-1)
    o = (att @ v).transpose(0, 2, 1, 3).reshape(B, T, C)
    h1 = x + o @ p["wo"]
    hn = rms(h1, p["g2"])
    ff = (jax.nn.silu(hn @ p["w1"]) * (hn @ p["w3"])) @ p["w2"]
    return h1 + ff


if __name__ == "__main__":
    # small config: batch=2, seq=32, n_embd=256, n_head=2 -> head_size=128
    # (head_size 128 exercises the direct, transpose-free attention layout;
    #  small attention/seq tile caps exercise multi-tile accumulation and the
    #  causal tile-skip / kv-clamp logic at runtime).
    B, T, C, H = 2, 32, 256, 2
    hs = C // H
    hidden = 4 * C

    key = jax.random.PRNGKey(0)
    ks = jax.random.split(key, 8)
    init = lambda kk, shape: (0.02 * jax.random.normal(kk, shape)).astype(jnp.float32)

    wq = init(ks[0], (C, C)); wk = init(ks[1], (C, C))
    wv = init(ks[2], (C, C)); wo = init(ks[3], (C, C))
    w1 = init(ks[4], (C, hidden)); w2 = init(ks[5], (hidden, C))
    w3 = init(ks[6], (C, hidden))
    g1 = jnp.ones((1, C), jnp.float32)
    g2 = jnp.ones((1, C), jnp.float32)
    x = jax.random.normal(ks[7], (B, T, C), jnp.float32)

    # rotary frequencies (freqs_cis equivalent), theta = 10000
    inv_freq = 1.0 / (10000.0 ** (jnp.arange(0, hs, 2, dtype=jnp.float32) / hs))
    angles = jnp.arange(T, dtype=jnp.float32)[:, None] * inv_freq[None, :]
    cos_half, sin_half = jnp.cos(angles), jnp.sin(angles)            # (T, hs//2)

    # per-head interleaved RoPE tables: cos repeated over pairs, sinA = -sin at
    # even lanes, sinB = +sin at odd lanes
    zeros_h = jnp.zeros_like(sin_half)
    cos_head = jnp.repeat(cos_half, 2, axis=-1)                       # (T, hs)
    sinA_head = jnp.stack([-sin_half, zeros_h], axis=-1).reshape(T, hs)
    sinB_head = jnp.stack([zeros_h, sin_half], axis=-1).reshape(T, hs)
    cos_C = jnp.tile(cos_head, (1, H))                                # (T, C)
    sinA_C = jnp.tile(sinA_head, (1, H))
    sinB_C = jnp.tile(sinB_head, (1, H))

    # (T, 3C) tables for the fused [q | k | v] slab; v section is identity and
    # the q section carries the folded 1/sqrt(head_size) softmax scale.
    qs = 1.0 / math.sqrt(hs)
    ones_C = jnp.ones((T, C), jnp.float32)
    zeros_C = jnp.zeros((T, C), jnp.float32)
    cos3 = jnp.concatenate([cos_C * qs, cos_C, ones_C], axis=-1)
    sinA3 = jnp.concatenate([sinA_C * qs, sinA_C, zeros_C], axis=-1)
    sinB3 = jnp.concatenate([sinB_C * qs, sinB_C, zeros_C], axis=-1)

    bf = jnp.bfloat16
    wq_b, wk_b, wv_b, wo_b = wq.astype(bf), wk.astype(bf), wv.astype(bf), wo.astype(bf)
    w1_b, w2_b, w3_b = w1.astype(bf), w2.astype(bf), w3.astype(bf)
    wqkv_b = jnp.concatenate([wq_b, wk_b, wv_b], axis=1)              # (C, 3C)

    params = dict(wqkv=wqkv_b, wo=wo_b, w1=w1_b, w2=w2_b, w3=w3_b, g1=g1, g2=g2)

    out = block_forward(x, params, cos3, sinA3, sinB3, n_head=H,
                        tq_cap=16, ta_cap=8)
    out = jax.block_until_ready(out)

    # f32 reference using the same (bf16-rounded) weight values
    ref_params = dict(wq=wq_b.astype(jnp.float32), wk=wk_b.astype(jnp.float32),
                      wv=wv_b.astype(jnp.float32), wo=wo_b.astype(jnp.float32),
                      w1=w1_b.astype(jnp.float32), w2=w2_b.astype(jnp.float32),
                      w3=w3_b.astype(jnp.float32), g1=g1, g2=g2)
    ref = reference_block(x, ref_params, cos_half, sin_half, n_head=H)

    assert out.shape == (B, T, C)
    max_err = float(jnp.max(jnp.abs(out - ref)))
    assert jnp.allclose(out, ref, rtol=2e-2, atol=2e-2), max_err
    print("KERNEL_OK")
</pallas_src>

<mosaic_0001>
module attributes {stable_mosaic.version = 11 : i64} {
  func.func @qkv_rope_kernel(%arg0: i32, %arg1: i32, %arg2: memref<1x16x256xf32, #tpu.memory_space<vmem>>, %arg3: memref<256x768xbf16, #tpu.memory_space<vmem>>, %arg4: memref<1x256xf32, #tpu.memory_space<vmem>>, %arg5: memref<16x768xf32, #tpu.memory_space<vmem>>, %arg6: memref<16x768xf32, #tpu.memory_space<vmem>>, %arg7: memref<16x768xf32, #tpu.memory_space<vmem>>, %arg8: memref<1x16x768xbf16, #tpu.memory_space<vmem>>) attributes {dimension_semantics = [#tpu.dimension_semantics<parallel>, #tpu.dimension_semantics<parallel>], iteration_bounds = array<i64: 2, 2>, scalar_prefetch = 0 : i64, scratch_operands = 0 : i64, tpu.core_type = #tpu.core_type<tc>, window_params = [{transform_indices = @transform_0, window_bounds = array<i64: 1, 16, 256>}, {pipeline_mode = #tpu.pipeline_mode<synchronous>, transform_indices = @transform_1, window_bounds = array<i64: 256, 768>}, {pipeline_mode = #tpu.pipeline_mode<synchronous>, transform_indices = @transform_2, window_bounds = array<i64: 1, 256>}, {transform_indices = @transform_3, window_bounds = array<i64: 16, 768>}, {transform_indices = @transform_4, window_bounds = array<i64: 16, 768>}, {transform_indices = @transform_5, window_bounds = array<i64: 16, 768>}, {transform_indices = @transform_6, window_bounds = array<i64: 1, 16, 768>}]} {
    %c0 = arith.constant 0 : index
    %c0_0 = arith.constant 0 : index
    %c0_1 = arith.constant 0 : index
    %0 = vector.load %arg2[%c0, %c0_0, %c0_1] : memref<1x16x256xf32, #tpu.memory_space<vmem>>, vector<1x16x256xf32>
    %1 = vector.shape_cast %0 : vector<1x16x256xf32> to vector<16x256xf32>
    %c0_2 = arith.constant 0 : index
    %c0_3 = arith.constant 0 : index
    %2 = vector.load %arg4[%c0_2, %c0_3] : memref<1x256xf32, #tpu.memory_space<vmem>>, vector<1x256xf32>
    %3 = arith.mulf %1, %1 : vector<16x256xf32>
    %cst = arith.constant dense<0.000000e+00> : vector<16xf32>
    %4 = vector.multi_reduction <add>, %3, %cst [1] : vector<16x256xf32> to vector<16xf32>
    %5 = vector.shape_cast %4 : vector<16xf32> to vector<16x1xf32>
    %cst_4 = arith.constant 2.560000e+02 : f32
    %6 = vector.broadcast %cst_4 : f32 to vector<16x1xf32>
    %7 = arith.divf %5, %6 : vector<16x1xf32>
    %cst_5 = arith.constant 9.99999997E-7 : f32
    %8 = vector.broadcast %cst_5 : f32 to vector<16x1xf32>
    %9 = arith.addf %7, %8 : vector<16x1xf32>
    %10 = math.rsqrt %9 : vector<16x1xf32>
    %11 = vector.broadcast %10 : vector<16x1xf32> to vector<16x256xf32>
    %12 = arith.mulf %1, %11 : vector<16x256xf32>
    %13 = vector.broadcast %2 : vector<1x256xf32> to vector<16x256xf32>
    %14 = arith.mulf %12, %13 : vector<16x256xf32>
    %15 = arith.truncf %14 : vector<16x256xf32> to vector<16x256xbf16>
    %c0_6 = arith.constant 0 : index
    %c0_7 = arith.constant 0 : index
    %16 = vector.load %arg3[%c0_6, %c0_7] : memref<256x768xbf16, #tpu.memory_space<vmem>>, vector<256x768xbf16>
    %cst_8 = arith.constant dense<0.000000e+00> : vector<16x768xf32>
    %17 = tpu.matmul %15, %16, %cst_8 {dimension_numbers = #tpu.dot_dimension_numbers<[1], [0], [0], [1], [0, 0, 1, 1], [], []>} : vector<16x256xbf16>, vector<256x768xbf16>, vector<16x768xf32> -> vector<16x768xf32>
    %c767_i32 = arith.constant 767 : i32
    %18 = tpu.dynamic_rotate %17 by %c767_i32 dim 1 : vector<16x768xf32>, i32 -> vector<16x768xf32>
    %c1_i32 = arith.constant 1 : i32
    %19 = tpu.dynamic_rotate %17 by %c1_i32 dim 1 : vector<16x768xf32>, i32 -> vector<16x768xf32>
    %c0_9 = arith.constant 0 : index
    %c0_10 = arith.constant 0 : index
    %20 = vector.load %arg5[%c0_9, %c0_10] : memref<16x768xf32, #tpu.memory_space<vmem>>, vector<16x768xf32>
    %21 = arith.mulf %17, %20 : vector<16x768xf32>
    %c0_11 = arith.constant 0 : index
    %c0_12 = arith.constant 0 : index
    %22 = vector.load %arg6[%c0_11, %c0_12] : memref<16x768xf32, #tpu.memory_space<vmem>>, vector<16x768xf32>
    %23 = arith.mulf %18, %22 : vector<16x768xf32>
    %24 = arith.addf %21, %23 : vector<16x768xf32>
    %c0_13 = arith.constant 0 : index
    %c0_14 = arith.constant 0 : index
    %25 = vector.load %arg7[%c0_13, %c0_14] : memref<16x768xf32, #tpu.memory_space<vmem>>, vector<16x768xf32>
    %26 = arith.mulf %19, %25 : vector<16x768xf32>
    %27 = arith.addf %24, %26 : vector<16x768xf32>
    %28 = arith.truncf %27 : vector<16x768xf32> to vector<16x768xbf16>
    %c0_15 = arith.constant 0 : index
    %c0_16 = arith.constant 0 : index
    %c0_17 = arith.constant 0 : index
    %29 = vector.load %arg8[%c0_15, %c0_16, %c0_17] : memref<1x16x768xbf16, #tpu.memory_space<vmem>>, vector<1x16x768xbf16>
    %30 = vector.shape_cast %29 : vector<1x16x768xbf16> to vector<16x768xbf16>
    %31 = vector.shape_cast %28 : vector<16x768xbf16> to vector<1x16x768xbf16>
    tpu.vector_store %arg8[%c0_15, %c0_16, %c0_17], %31 {strides = array<i32>} : memref<1x16x768xbf16, #tpu.memory_space<vmem>>, vector<1x16x768xbf16>,
    return
  }
  func.func @transform_0(%arg0: i32, %arg1: i32) -> (i32, i32, i32) {
    %c0_i32 = arith.constant 0 : i32
    %c0_i32_0 = arith.constant 0 : i32
    return %arg0, %arg1, %c0_i32 : i32, i32, i32
  }
  func.func @transform_1(%arg0: i32, %arg1: i32) -> (i32, i32) {
    %c0_i32 = arith.constant 0 : i32
    %c0_i32_0 = arith.constant 0 : i32
    %c0_i32_1 = arith.constant 0 : i32
    return %c0_i32, %c0_i32_0 : i32, i32
  }
  func.func @transform_2(%arg0: i32, %arg1: i32) -> (i32, i32) {
    %c0_i32 = arith.constant 0 : i32
    %c0_i32_0 = arith.constant 0 : i32
    %c0_i32_1 = arith.constant 0 : i32
    return %c0_i32, %c0_i32_0 : i32, i32
  }
  func.func @transform_3(%arg0: i32, %arg1: i32) -> (i32, i32) {
    %c0_i32 = arith.constant 0 : i32
    %c0_i32_0 = arith.constant 0 : i32
    return %arg1, %c0_i32 : i32, i32
  }
  func.func @transform_4(%arg0: i32, %arg1: i32) -> (i32, i32) {
    %c0_i32 = arith.constant 0 : i32
    %c0_i32_0 = arith.constant 0 : i32
    return %arg1, %c0_i32 : i32, i32
  }
  func.func @transform_5(%arg0: i32, %arg1: i32) -> (i32, i32) {
    %c0_i32 = arith.constant 0 : i32
    %c0_i32_0 = arith.constant 0 : i32
    return %arg1, %c0_i32 : i32, i32
  }
  func.func @transform_6(%arg0: i32, %arg1: i32) -> (i32, i32, i32) {
    %c0_i32 = arith.constant 0 : i32
    %c0_i32_0 = arith.constant 0 : i32
    return %arg0, %arg1, %c0_i32 : i32, i32, i32
  }
}

</mosaic_0001>

<llo_original>
// kernel: tpu_custom_call.1
$region0: #{tpu_custom_call.1}
  #allocation0 [shape = 'u32[]', space=smem, size = 0x4, offset = 0x4, fixed_abs, tag = 'smem constant byte address 0x4 - core index']
  #allocation1 [shape = 'u32[144,128]{1,0:T(1,128)}', space=vmem, size = 0x12000, scoped, tag = 'internal scratch']
  %s0 = inlined_call_operand.hbm [shape: f32[2,32,256], index: 0, kind: input, shape index: {}]
  %s1 = inlined_call_operand.hbm [shape: bf16[256,768], index: 1, kind: input, shape index: {}]
  %s2 = inlined_call_operand.vmem [shape: f32[1,256], index: 2, kind: input, shape index: {}]
  %s3 = inlined_call_operand.hbm [shape: f32[32,768], index: 3, kind: input, shape index: {}]
  %s4 = inlined_call_operand.hbm [shape: f32[32,768], index: 4, kind: input, shape index: {}]
  %s5 = inlined_call_operand.hbm [shape: f32[32,768], index: 5, kind: input, shape index: {}]
  %s6 = inlined_call_operand.hbm [shape: bf16[2,32,768], index: 6, kind: output, shape index: {}]
  %s7 = sld [smem:[#allocation0]]
  $region77: #{tpu_custom_call.1} parent=0
    _
  %s9 = ssub.s32 1, %s7
  %s10 = scalar_select 0, %s9, %s7
  $region1: #{tpu_custom_call.1} parent=0
    #allocation2 [shape = 'u8[32768]{0}', space=vmem, size = 0x8000, scoped, tag = 'input window, operand 0']
    #allocation3 [shape = 's32[2]{0}', space=sflag, size = 0x8, scoped, tag = 'scoped memory for tpu_custom_call.1']
    #allocation4 [shape = 's32[2]{0}', space=sflag, size = 0x8, scoped, tag = 'scoped memory for tpu_custom_call.1']
    #allocation5 [shape = 'u8[393216]{0}', space=vmem, size = 0x60000, scoped, tag = 'input window, operand 1, single buffered']
    #allocation6 [shape = 's32[1]{0}', space=sflag, size = 0x4, scoped, tag = 'scoped memory for tpu_custom_call.1']
    #allocation7 [shape = 'u8[98304]{0}', space=vmem, size = 0x18000, scoped, tag = 'input window, operand 3']
    #allocation8 [shape = 'u8[98304]{0}', space=vmem, size = 0x18000, scoped, tag = 'input window, operand 4']
    #allocation9 [shape = 'u8[98304]{0}', space=vmem, size = 0x18000, scoped, tag = 'input window, operand 5']
    #allocation10 [shape = 'u8[49152]{0}', space=vmem, size = 0xc000, scoped, tag = 'output window, operand 0']
    %11 = vsyncpa [#allocation3], 0
    %s12 = scalar_lea.sflag [#allocation3], 1
    %13 = vsyncpa %s12, 0
    %14 = vsyncpa [#allocation6], 0
    %15 = vsyncpa [#allocation4], 0
    %s16 = scalar_lea.sflag [#allocation4], 1
    %17 = vsyncpa %s16, 0
    loop: start=0, step=1, limit=6
    $region2: #{tpu_custom_call.1} parent=1 // loop_pre_header
      _
    $region3: #{tpu_custom_call.1} parent=1 // loop_header
      %s19 = sphi 0, %s23
      %p20 = scmp.ge.s32.totalorder %s19, 6
      %s26 = sphi 0, %s38
      %s27 = sphi 0, %s34
      %s28 = sphi 0, %s26
      %s29 = sphi 0, %s27
      %s30 = sphi 0, %s28
      %s31 = sphi 0, %s29
      %s43 = sphi 0, %s45
      %s46 = sphi 0, %s43
      %s47 = sphi 0, %s46
      %s63 = sphi 0, %s47
      %s67 = sphi 0, %s67
      %s69 = sphi 0, %s67
      %s70 = sphi 0, %s69
      %s84 = sphi 0, %s70
      %s88 = sphi 0, %s88
      %s90 = sphi 0, %s88
      %s91 = sphi 0, %s90
      %s105 = sphi 0, %s91
      %s111 = sphi 0, %s113
      %s114 = sphi 0, %s111
      %s115 = sphi 0, %s114
      %s131 = sphi 0, %s115
      %s137 = sphi 0, %s139
      %s140 = sphi 0, %s137
      %s141 = sphi 0, %s140
      %s157 = sphi 0, %s141
      %s163 = sphi 0, %s165
      %s166 = sphi 0, %s163
      %s167 = sphi 0, %s166
      %s183 = sphi 0, %s167
      %s191 = sphi 0, %s193
      %s194 = sphi 0, %s191
      %s195 = sphi 0, %s194
      %s211 = sphi 0, %s195
    $region4: #{tpu_custom_call.1} parent=1 // loop_header_branch
      %22 = sbr.rel (%p20) target = $region8
    $region5: #{tpu_custom_call.1} parent=1 // loop_body
      %s24 = ssub.s32 %s19, 1
      %s25 = ssub.s32 %s19, 2
      %s32 = sadd.s32 1, %s27
      %p33 = scmp.ge.s32.totalorder %s32, 2
      %s34 = scalar_select %p33, 0, %s32
      %s35 = sadd.s32 1, %s26
      %s36 = scalar_select %p33, %s35, %s26
      %p37 = scmp.ge.s32.totalorder %s36, 2
      %s38 = scalar_select %p37, 0, %s36
      %s39 = ssub.s32 %s26, %s38
      %s40 = ssub.s32 %s27, %s34
      %s41 = sor.u32 %s39, %s40
      %p42 = scmp.eq.s32.totalorder %s41, 0
      %s44 = sadd.s32 %s43, 1
      %s45 = scalar_select %p42, %s43, %s44
      %p48 = pneg %p42
      %p49 = scmp.eq.s32.totalorder %s19, 3
      %p50 = por %p48, %p49
      %p51 = scmp.ne.s32.totalorder %s43, %s46
      %p52 = scmp.eq.s32.totalorder %s19, 0
      %p53 = por %p51, %p52
      %p54 = scmp.ne.s32.totalorder %s43, %s46
      %p55 = scmp.eq.s32.totalorder %s24, 3
      %p56 = por %p54, %p55
      %p57 = scmp.ne.s32.totalorder %s46, %s47
      %p58 = scmp.eq.s32.totalorder %s24, 0
      %p59 = por %p57, %p58
      %p60 = scmp.ne.s32.totalorder %s46, %s47
      %p61 = scmp.eq.s32.totalorder %s25, 3
      %p62 = por %p60, %p61
      %p64 = scmp.ne.s32.totalorder %s47, %s63
      %p65 = scmp.eq.s32.totalorder %s25, 0
      %p66 = por %p64, %p65
      %s68 = sadd.s32 %s67, 1
      %p71 = scmp.eq.s32.totalorder %s19, 3
      %p72 = scmp.ne.s32.totalorder %s67, %s69
      %p73 = scmp.eq.s32.totalorder %s19, 0
      %p74 = por %p72, %p73
      %p75 = scmp.ne.s32.totalorder %s67, %s69
      %p76 = scmp.eq.s32.totalorder %s24, 3
      %p77 = por %p75, %p76
      %p78 = scmp.ne.s32.totalorder %s69, %s70
      %p79 = scmp.eq.s32.totalorder %s24, 0
      %p80 = por %p78, %p79
      %p81 = scmp.ne.s32.totalorder %s69, %s70
      %p82 = scmp.eq.s32.totalorder %s25, 3
      %p83 = por %p81, %p82
      %p85 = scmp.ne.s32.totalorder %s70, %s84
      %p86 = scmp.eq.s32.totalorder %s25, 0
      %p87 = por %p85, %p86
      %s89 = sadd.s32 %s88, 1
      %p92 = scmp.eq.s32.totalorder %s19, 3
      %p93 = scmp.ne.s32.totalorder %s88, %s90
      %p94 = scmp.eq.s32.totalorder %s19, 0
      %p95 = por %p93, %p94
      %p96 = scmp.ne.s32.totalorder %s88, %s90
      %p97 = scmp.eq.s32.totalorder %s24, 3
      %p98 = por %p96, %p97
      %p99 = scmp.ne.s32.totalorder %s90, %s91
      %p100 = scmp.eq.s32.totalorder %s24, 0
      %p101 = por %p99, %p100
      %p102 = scmp.ne.s32.totalorder %s90, %s91
      %p103 = scmp.eq.s32.totalorder %s25, 3
      %p104 = por %p102, %p103
      %p106 = scmp.ne.s32.totalorder %s91, %s105
      %p107 = scmp.eq.s32.totalorder %s25, 0
      %p108 = por %p106, %p107
      %s109 = ssub.s32 %s27, %s34
      %p110 = scmp.eq.s32.totalorder %s109, 0
      %s112 = sadd.s32 %s111, 1
      %s113 = scalar_select %p110, %s111, %s112
      %p116 = pneg %p110
      %p117 = scmp.eq.s32.totalorder %s19, 3
      %p118 = por %p116, %p117
      %p119 = scmp.ne.s32.totalorder %s111, %s114
      %p120 = scmp.eq.s32.totalorder %s19, 0
      %p121 = por %p119, %p120
      %p122 = scmp.ne.s32.totalorder %s111, %s114
      %p123 = scmp.eq.s32.totalorder %s24, 3
      %p124 = por %p122, %p123
      %p125 = scmp.ne.s32.totalorder %s114, %s115
      %p126 = scmp.eq.s32.totalorder %s24, 0
      %p127 = por %p125, %p126
      %p128 = scmp.ne.s32.totalorder %s114, %s115
      %p129 = scmp.eq.s32.totalorder %s25, 3
      %p130 = por %p128, %p129
      %p132 = scmp.ne.s32.totalorder %s115, %s131
      %p133 = scmp.eq.s32.totalorder %s25, 0
      %p134 = por %p132, %p133
      %s135 = ssub.s32 %s27, %s34
      %p136 = scmp.eq.s32.totalorder %s135, 0
      %s138 = sadd.s32 %s137, 1
      %s139 = scalar_select %p136, %s137, %s138
      %p142 = pneg %p136
      %p143 = scmp.eq.s32.totalorder %s19, 3
      %p144 = por %p142, %p143
      %p145 = scmp.ne.s32.totalorder %s137, %s140
      %p146 = scmp.eq.s32.totalorder %s19, 0
      %p147 = por %p145, %p146
      %p148 = scmp.ne.s32.totalorder %s137, %s140
      %p149 = scmp.eq.s32.totalorder %s24, 3
      %p150 = por %p148, %p149
      %p151 = scmp.ne.s32.totalorder %s140, %s141
      %p152 = scmp.eq.s32.totalorder %s24, 0
      %p153 = por %p151, %p152
      %p154 = scmp.ne.s32.totalorder %s140, %s141
      %p155 = scmp.eq.s32.totalorder %s25, 3
      %p156 = por %p154, %p155
      %p158 = scmp.ne.s32.totalorder %s141, %s157
      %p159 = scmp.eq.s32.totalorder %s25, 0
      %p160 = por %p158, %p159
      %s161 = ssub.s32 %s27, %s34
      %p162 = scmp.eq.s32.totalorder %s161, 0
      %s164 = sadd.s32 %s163, 1
      %s165 = scalar_select %p162, %s163, %s164
      %p168 = pneg %p162
      %p169 = scmp.eq.s32.totalorder %s19, 3
      %p170 = por %p168, %p169
      %p171 = scmp.ne.s32.totalorder %s163, %s166
      %p172 = scmp.eq.s32.totalorder %s19, 0
      %p173 = por %p171, %p172
      %p174 = scmp.ne.s32.totalorder %s163, %s166
      %p175 = scmp.eq.s32.totalorder %s24, 3
      %p176 = por %p174, %p175
      %p177 = scmp.ne.s32.totalorder %s166, %s167
      %p178 = scmp.eq.s32.totalorder %s24, 0
      %p179 = por %p177, %p178
      %p180 = scmp.ne.s32.totalorder %s166, %s167
      %p181 = scmp.eq.s32.totalorder %s25, 3
      %p182 = por %p180, %p181
      %p184 = scmp.ne.s32.totalorder %s167, %s183
      %p185 = scmp.eq.s32.totalorder %s25, 0
      %p186 = por %p184, %p185
      %s187 = ssub.s32 %s26, %s38
      %s188 = ssub.s32 %s27, %s34
      %s189 = sor.u32 %s187, %s188
      %p190 = scmp.eq.s32.totalorder %s189, 0
      %s192 = sadd.s32 %s191, 1
      %s193 = scalar_select %p190, %s191, %s192
      %p196 = pneg %p190
      %p197 = scmp.eq.s32.totalorder %s19, 3
      %p198 = por %p196, %p197
      %p199 = scmp.ne.s32.totalorder %s191, %s194
      %p200 = scmp.eq.s32.totalorder %s19, 0
      %p201 = por %p199, %p200
      %p202 = scmp.ne.s32.totalorder %s191, %s194
      %p203 = scmp.eq.s32.totalorder %s24, 3
      %p204 = por %p202, %p203
      %p205 = scmp.ne.s32.totalorder %s194, %s195
      %p206 = scmp.eq.s32.totalorder %s24, 0
      %p207 = por %p205, %p206
      %p208 = scmp.ne.s32.totalorder %s194, %s195
      %p209 = scmp.eq.s32.totalorder %s25, 3
      %p210 = por %p208, %p209
      %p212 = scmp.ne.s32.totalorder %s195, %s211
      %p213 = scmp.eq.s32.totalorder %s25, 0
      %p214 = por %p212, %p213
      %p215 = scmp.le.s32.totalorder 1, %s19
      %p216 = scmp.lt.s32.totalorder %s19, 5
      %p217 = pnand %p215, %p216
      %p218 = pneg %p217
      // Predicated region
      $region9: #{tpu_custom_call.1} parent=5 // pred_check
        _
      $region10: #{tpu_custom_call.1} parent=5 // pred_check_branch
        %220 = sbr.rel (%p217) target = $region12
      $region11: #{tpu_custom_call.1} parent=5 // pred_region
        %s221 = ssub.s32 %s19, 1
        // Predicated region
        $region13: #{tpu_custom_call.1} parent=11 // pred_check
          %p222 = pneg %p80
        $region14: #{tpu_custom_call.1} parent=11 // pred_check_branch
          %224 = sbr.rel (%p222) target = $region16
        $region15: #{tpu_custom_call.1} parent=11 // pred_region
          %s226 = ssub.s32 12288, 12288
          %227 = vsyncadd [#allocation6], %s226
          %s228 = sshll.u32 [#allocation5], 4
          %s229 = int_to_ptr.vmem [resolvable:$true] %s228
          %234 = dma.hbm_to_vmem [thread:$0]  %s1, 12288, %s229, [#allocation6], 384, 384, 24
        $region16: #{tpu_custom_call.1} parent=11 // pred_fallthru
          _
        // Predicated region
        $region17: #{tpu_custom_call.1} parent=11 // pred_check
          %p235 = pneg %p101
        $region18: #{tpu_custom_call.1} parent=11 // pred_check_branch
          %237 = sbr.rel (%p235) target = $region20
        $region19: #{tpu_custom_call.1} parent=11 // pred_region
          _
        $region20: #{tpu_custom_call.1} parent=11 // pred_fallthru
          _
      $region12: #{tpu_custom_call.1} parent=5 // pred_fallthru
        _
      %p238 = scmp.lt.s32.totalorder %s19, 4
      // Predicated region
      $region21: #{tpu_custom_call.1} parent=5 // pred_check
        %p239 = pneg %p238
      $region22: #{tpu_custom_call.1} parent=5 // pred_check_branch
        %241 = sbr.rel (%p239) target = $region24
      $region23: #{tpu_custom_call.1} parent=5 // pred_region
        // Predicated region
        $region25: #{tpu_custom_call.1} parent=23 // pred_check
          %p242 = pneg %p53
        $region26: #{tpu_custom_call.1} parent=23 // pred_check_branch
          %244 = sbr.rel (%p242) target = $region28
        $region27: #{tpu_custom_call.1} parent=23 // pred_region
          %s245 = sand.u32 %s19, 1
          %s246 = scalar_lea.sflag [#allocation3], %s245
          %s247 = sand.u32 %s43, 1
          %s248 = smul.addr %s247, 32
          %s249 = scalar_lea.vmem [#allocation2], %s248
          %s250 = smul.u32 2, %s27
          %s252 = ssub.s32 512, 512
          %253 = vsyncadd %s246, %s252
          %s254 = smul.addr %s250, 2
          %s255 = smul.addr %s26, 8
          %s256 = sadd.s32 %s254, %s255
          %s257 = smul.addr %s256, 128
          %s258 = scalar_lea.hbm %s0, %s257
          %s259 = sshll.u32 %s249, 4
          %s260 = int_to_ptr.vmem [resolvable:$true] %s259
          %265 = dma.hbm_to_vmem [thread:$0]  %s258, 512, %s260, %s246, 256, 256, 16
        $region28: #{tpu_custom_call.1} parent=23 // pred_fallthru
          _
        // Predicated region
        $region29: #{tpu_custom_call.1} parent=23 // pred_check
          %p266 = pneg %p121
        $region30: #{tpu_custom_call.1} parent=23 // pred_check_branch
          %268 = sbr.rel (%p266) target = $region32
        $region31: #{tpu_custom_call.1} parent=23 // pred_region
          %s269 = sand.u32 %s19, 1
          %s270 = scalar_lea.sflag [#allocation3], %s269
          %s271 = sand.u32 %s111, 1
          %s272 = smul.addr %s271, 96
          %s273 = scalar_lea.vmem [#allocation7], %s272
          %s274 = smul.u32 2, %s27
          %s276 = ssub.s32 1536, 1536
          %277 = vsyncadd %s270, %s276
          %s278 = smul.addr %s274, 6
          %s279 = smul.addr %s278, 128
          %s280 = scalar_lea.hbm %s3, %s279
          %s281 = sshll.u32 %s273, 4
          %s282 = int_to_ptr.vmem [resolvable:$true] %s281
          %287 = dma.hbm_to_vmem [thread:$0]  %s280, 1536, %s282, %s270, 768, 768, 48
        $region32: #{tpu_custom_call.1} parent=23 // pred_fallthru
          _
        // Predicated region
        $region33: #{tpu_custom_call.1} parent=23 // pred_check
          %p288 = pneg %p147
        $region34: #{tpu_custom_call.1} parent=23 // pred_check_branch
          %290 = sbr.rel (%p288) target = $region36
        $region35: #{tpu_custom_call.1} parent=23 // pred_region
          %s291 = sand.u32 %s19, 1
          %s292 = scalar_lea.sflag [#allocation3], %s291
          %s293 = sand.u32 %s137, 1
          %s294 = smul.addr %s293, 96
          %s295 = scalar_lea.vmem [#allocation8], %s294
          %s296 = smul.u32 2, %s27
          %s298 = ssub.s32 1536, 1536
          %299 = vsyncadd %s292, %s298
          %s300 = smul.addr %s296, 6
          %s301 = smul.addr %s300, 128
          %s302 = scalar_lea.hbm %s4, %s301
          %s303 = sshll.u32 %s295, 4
          %s304 = int_to_ptr.vmem [resolvable:$true] %s303
          %309 = dma.hbm_to_vmem [thread:$0]  %s302, 1536, %s304, %s292, 768, 768, 48
        $region36: #{tpu_custom_call.1} parent=23 // pred_fallthru
          _
        // Predicated region
        $region37: #{tpu_custom_call.1} parent=23 // pred_check
          %p310 = pneg %p173
        $region38: #{tpu_custom_call.1} parent=23 // pred_check_branch
          %312 = sbr.rel (%p310) target = $region40
        $region39: #{tpu_custom_call.1} parent=23 // pred_region
          %s313 = sand.u32 %s19, 1
          %s314 = scalar_lea.sflag [#allocation3], %s313
          %s315 = sand.u32 %s163, 1
          %s316 = smul.addr %s315, 96
          %s317 = scalar_lea.vmem [#allocation9], %s316
          %s318 = smul.u32 2, %s27
          %s320 = ssub.s32 1536, 1536
          %321 = vsyncadd %s314, %s320
          %s322 = smul.addr %s318, 6
          %s323 = smul.addr %s322, 128
          %s324 = scalar_lea.hbm %s5, %s323
          %s325 = sshll.u32 %s317, 4
          %s326 = int_to_ptr.vmem [resolvable:$true] %s325
          %331 = dma.hbm_to_vmem [thread:$0]  %s324, 1536, %s326, %s314, 768, 768, 48
        $region40: #{tpu_custom_call.1} parent=23 // pred_fallthru
          _
      $region24: #{tpu_custom_call.1} parent=5 // pred_fallthru
        _
      %p332 = scmp.le.s32.totalorder 1, %s19
      %p333 = scmp.lt.s32.totalorder %s19, 5
      %p334 = pnand %p332, %p333
      %p335 = pneg %p334
      // Predicated region
      $region41: #{tpu_custom_call.1} parent=5 // pred_check
        _
      $region42: #{tpu_custom_call.1} parent=5 // pred_check_branch
        %337 = sbr.rel (%p334) target = $region44
      $region43: #{tpu_custom_call.1} parent=5 // pred_region
        %s338 = ssub.s32 %s19, 1
        %s339 = sand.u32 %s24, 1
        %s340 = scalar_lea.sflag [#allocation3], %s339
        %s341 = sand.u32 %s46, 1
        %s342 = smul.addr %s341, 32
        %s343 = scalar_lea.vmem [#allocation2], %s342
        // Predicated region
        $region45: #{tpu_custom_call.1} parent=43 // pred_check
          %p344 = pneg %p59
        $region46: #{tpu_custom_call.1} parent=43 // pred_check_branch
          %346 = sbr.rel (%p344) target = $region48
        $region47: #{tpu_custom_call.1} parent=43 // pred_region
          %347 = dma.done %s340, 512
        $region48: #{tpu_custom_call.1} parent=43 // pred_fallthru
          _
        // Predicated region
        $region49: #{tpu_custom_call.1} parent=43 // pred_check
          %p348 = pneg %p80
        $region50: #{tpu_custom_call.1} parent=43 // pred_check_branch
          %350 = sbr.rel (%p348) target = $region52
        $region51: #{tpu_custom_call.1} parent=43 // pred_region
          %351 = dma.done [#allocation6], 12288
        $region52: #{tpu_custom_call.1} parent=43 // pred_fallthru
          _
        %s352 = sand.u32 %s24, 1
        %s353 = scalar_lea.sflag [#allocation3], %s352
        %s354 = sand.u32 %s114, 1
        %s355 = smul.addr %s354, 96
        %s356 = scalar_lea.vmem [#allocation7], %s355
        // Predicated region
        $region53: #{tpu_custom_call.1} parent=43 // pred_check
          %p357 = pneg %p127
        $region54: #{tpu_custom_call.1} parent=43 // pred_check_branch
          %359 = sbr.rel (%p357) target = $region56
        $region55: #{tpu_custom_call.1} parent=43 // pred_region
          %360 = dma.done %s353, 1536
        $region56: #{tpu_custom_call.1} parent=43 // pred_fallthru
          _
        %s361 = sand.u32 %s24, 1
        %s362 = scalar_lea.sflag [#allocation3], %s361
        %s363 = sand.u32 %s140, 1
        %s364 = smul.addr %s363, 96
        %s365 = scalar_lea.vmem [#allocation8], %s364
        // Predicated region
        $region57: #{tpu_custom_call.1} parent=43 // pred_check
          %p366 = pneg %p153
        $region58: #{tpu_custom_call.1} parent=43 // pred_check_branch
          %368 = sbr.rel (%p366) target = $region60
        $region59: #{tpu_custom_call.1} parent=43 // pred_region
          %369 = dma.done %s362, 1536
        $region60: #{tpu_custom_call.1} parent=43 // pred_fallthru
          _
        %s370 = sand.u32 %s24, 1
        %s371 = scalar_lea.sflag [#allocation3], %s370
        %s372 = sand.u32 %s166, 1
        %s373 = smul.addr %s372, 96
        %s374 = scalar_lea.vmem [#allocation9], %s373
        // Predicated region
        $region61: #{tpu_custom_call.1} parent=43 // pred_check
          %p375 = pneg %p179
        $region62: #{tpu_custom_call.1} parent=43 // pred_check_branch
          %377 = sbr.rel (%p375) target = $region64
        $region63: #{tpu_custom_call.1} parent=43 // pred_region
          %378 = dma.done %s371, 1536
        $region64: #{tpu_custom_call.1} parent=43 // pred_fallthru
          _
        %s379 = sand.u32 %s24, 1
        %s380 = scalar_lea.sflag [#allocation3], %s379
        %s381 = sand.u32 %s46, 1
        %s382 = smul.addr %s381, 32
        %s383 = scalar_lea.vmem [#allocation2], %s382
        %p384 = pneg %p59
        %p385 = pneg %p56
        %p386 = pneg %p80
        %p387 = pneg %p77
        %p388 = pneg %p101
        %p389 = pneg %p98
        %s390 = sand.u32 %s24, 1
        %s391 = scalar_lea.sflag [#allocation3], %s390
        %s392 = sand.u32 %s114, 1
        %s393 = smul.addr %s392, 96
        %s394 = scalar_lea.vmem [#allocation7], %s393
        %p395 = pneg %p127
        %p396 = pneg %p124
        %s397 = sand.u32 %s24, 1
        %s398 = scalar_lea.sflag [#allocation3], %s397
        %s399 = sand.u32 %s140, 1
        %s400 = smul.addr %s399, 96
        %s401 = scalar_lea.vmem [#allocation8], %s400
        %p402 = pneg %p153
        %p403 = pneg %p150
        %s404 = sand.u32 %s24, 1
        %s405 = scalar_lea.sflag [#allocation3], %s404
        %s406 = sand.u32 %s166, 1
        %s407 = smul.addr %s406, 96
        %s408 = scalar_lea.vmem [#allocation9], %s407
        %p409 = pneg %p179
        %p410 = pneg %p176
        %p411 = pneg %p207
        %p412 = pneg %p204
        %s413 = sand.u32 %s194, 1
        %s414 = scalar_lea.sflag [#allocation4], %s413
        %s415 = sand.u32 %s194, 1
        %s416 = smul.addr %s415, 48
        %s417 = scalar_lea.vmem [#allocation10], %s416
        %s418 = smul.u32 2, %s29
        %s419 = smul.u32 2, %s29
        %s420 = smul.u32 2, %s29
        %s421 = smul.u32 2, %s29
        %s422 = smul.u32 2, %s29
        %v423 = vld [vmem:[%s343] sm:$0xff]
        %v424 = vld [vmem:[%s343 + $0x8] sm:$0xff]
        %v425 = vld [vmem:[%s343 + $0x10] sm:$0xff]
        %v426 = vld [vmem:[%s343 + $0x18] sm:$0xff]
        %v427 = vld [vmem:[%s2] sm:$0x3]
        %v428 = vmul.f32 %v423, %v423
        %v429 = vmul.f32 %v424, %v424
        %v430 = vmul.f32 %v425, %v425
        %v431 = vmul.f32 %v426, %v426
        %v432 = vadd.f32 %v428, %v429
        %433 = vadd.xlane.f32.xlu0 %v432
        %v434 = vpop.xlane.xlu0 %433
        %v435 = vadd.f32 %v430, %v431
        %436 = vadd.xlane.f32.xlu0 %v435
        %v437 = vpop.xlane.xlu0 %436
        %v438 = vrcp.pop 256.0
        %v439 = vmul.f32 %v434, %v438
        %v440 = vmul.f32 %v437, %v438
        %v441 = vadd.f32 %v439, 1e-06
        %v442 = vadd.f32 %v440, 1e-06
        %v443 = vrsqrt.pop %v441
        %v444 = vrsqrt.pop %v442
        %v445 = vmul.f32 %v423, %v443
        %v446 = vmul.f32 %v424, %v443
        %v447 = vmul.f32 %v425, %v444
        %v448 = vmul.f32 %v426, %v444
        %v450 = vlaneseq
        %v451 = vshrl.u32 %v450, 7
        %v452 = vsub.s32 0, %v451
        %v453 = vrot.slane %v427, %v452
        %v454 = vlaneseq
        %v455 = vshrl.u32 %v454, 7
        %v456 = vsub.s32 1, %v455
        %v457 = vrot.slane %v427, %v456
        %v460 = vmul.f32 %v445, %v453
        %v461 = vmul.f32 %v446, %v457
        %v462 = vmul.f32 %v447, %v453
        %v463 = vmul.f32 %v448, %v457
        %v464 = vpack.c.bf16 %v462, %v460
        %v465 = vpack.c.bf16 %v463, %v461
        %v466 = vld [vmem:[#allocation5] sm:$0xff]
        %v467 = vld [vmem:[#allocation5 + $0x8] sm:$0xff]
        %v468 = vld [vmem:[#allocation5 + $0x10] sm:$0xff]
        %v469 = vld [vmem:[#allocation5 + $0x18] sm:$0xff]
        %v470 = vld [vmem:[#allocation5 + $0x20] sm:$0xff]
        %v471 = vld [vmem:[#allocation5 + $0x28] sm:$0xff]
        %v472 = vld [vmem:[#allocation5 + $0x30] sm:$0xff]
        %v473 = vld [vmem:[#allocation5 + $0x38] sm:$0xff]
        %v474 = vld [vmem:[#allocation5 + $0x40] sm:$0xff]
        %v475 = vld [vmem:[#allocation5 + $0x48] sm:$0xff]
        %v476 = vld [vmem:[#allocation5 + $0x50] sm:$0xff]
        %v477 = vld [vmem:[#allocation5 + $0x58] sm:$0xff]
        %v478 = vld [vmem:[#allocation5 + $0x60] sm:$0xff]
        %v479 = vld [vmem:[#allocation5 + $0x68] sm:$0xff]
        %v480 = vld [vmem:[#allocation5 + $0x70] sm:$0xff]
        %v481 = vld [vmem:[#allocation5 + $0x78] sm:$0xff]
        %v482 = vld [vmem:[#allocation5 + $0x80] sm:$0xff]
        %v483 = vld [vmem:[#allocation5 + $0x88] sm:$0xff]
        %v484 = vld [vmem:[#allocation5 + $0x90] sm:$0xff]
        %v485 = vld [vmem:[#allocation5 + $0x98] sm:$0xff]
        %v486 = vld [vmem:[#allocation5 + $0xa0] sm:$0xff]
        %v487 = vld [vmem:[#allocation5 + $0xa8] sm:$0xff]
        %v488 = vld [vmem:[#allocation5 + $0xb0] sm:$0xff]
        %v489 = vld [vmem:[#allocation5 + $0xb8] sm:$0xff]
        %v490 = vld [vmem:[#allocation5 + $0xc0] sm:$0xff]
        %v491 = vld [vmem:[#allocation5 + $0xc8] sm:$0xff]
        %v492 = vld [vmem:[#allocation5 + $0xd0] sm:$0xff]
        %v493 = vld [vmem:[#allocation5 + $0xd8] sm:$0xff]
        %v494 = vld [vmem:[#allocation5 + $0xe0] sm:$0xff]
        %v495 = vld [vmem:[#allocation5 + $0xe8] sm:$0xff]
        %v496 = vld [vmem:[#allocation5 + $0xf0] sm:$0xff]
        %v497 = vld [vmem:[#allocation5 + $0xf8] sm:$0xff]
        %v498 = vld [vmem:[#allocation5 + $0x100] sm:$0xff]
        %v499 = vld [vmem:[#allocation5 + $0x108] sm:$0xff]
        %v500 = vld [vmem:[#allocation5 + $0x110] sm:$0xff]
        %v501 = vld [vmem:[#allocation5 + $0x118] sm:$0xff]
        %v502 = vld [vmem:[#allocation5 + $0x120] sm:$0xff]
        %v503 = vld [vmem:[#allocation5 + $0x128] sm:$0xff]
        %v504 = vld [vmem:[#allocation5 + $0x130] sm:$0xff]
        %v505 = vld [vmem:[#allocation5 + $0x138] sm:$0xff]
        %v506 = vld [vmem:[#allocation5 + $0x140] sm:$0xff]
        %v507 = vld [vmem:[#allocation5 + $0x148] sm:$0xff]
        %v508 = vld [vmem:[#allocation5 + $0x150] sm:$0xff]
        %v509 = vld [vmem:[#allocation5 + $0x158] sm:$0xff]
        %v510 = vld [vmem:[#allocation5 + $0x160] sm:$0xff]
        %v511 = vld [vmem:[#allocation5 + $0x168] sm:$0xff]
        %v512 = vld [vmem:[#allocation5 + $0x170] sm:$0xff]
        %v513 = vld [vmem:[#allocation5 + $0x178] sm:$0xff]
        %v514 = vld [vmem:[#allocation5 + $0x180] sm:$0xff]
        %v515 = vld [vmem:[#allocation5 + $0x188] sm:$0xff]
        %v516 = vld [vmem:[#allocation5 + $0x190] sm:$0xff]
        %v517 = vld [vmem:[#allocation5 + $0x198] sm:$0xff]
        %v518 = vld [vmem:[#allocation5 + $0x1a0] sm:$0xff]
        %v519 = vld [vmem:[#allocation5 + $0x1a8] sm:$0xff]
        %v520 = vld [vmem:[#allocation5 + $0x1b0] sm:$0xff]
        %v521 = vld [vmem:[#allocation5 + $0x1b8] sm:$0xff]
        %v522 = vld [vmem:[#allocation5 + $0x1c0] sm:$0xff]
        %v523 = vld [vmem:[#allocation5 + $0x1c8] sm:$0xff]
        %v524 = vld [vmem:[#allocation5 + $0x1d0] sm:$0xff]
        %v525 = vld [vmem:[#allocation5 + $0x1d8] sm:$0xff]
        %v526 = vld [vmem:[#allocation5 + $0x1e0] sm:$0xff]
        %v527 = vld [vmem:[#allocation5 + $0x1e8] sm:$0xff]
        %v528 = vld [vmem:[#allocation5 + $0x1f0] sm:$0xff]
        %v529 = vld [vmem:[#allocation5 + $0x1f8] sm:$0xff]
        %v530 = vld [vmem:[#allocation5 + $0x200] sm:$0xff]
        %v531 = vld [vmem:[#allocation5 + $0x208] sm:$0xff]
        %v532 = vld [vmem:[#allocation5 + $0x210] sm:$0xff]
        %v533 = vld [vmem:[#allocation5 + $0x218] sm:$0xff]
        %v534 = vld [vmem:[#allocation5 + $0x220] sm:$0xff]
        %v535 = vld [vmem:[#allocation5 + $0x228] sm:$0xff]
        %v536 = vld [vmem:[#allocation5 + $0x230] sm:$0xff]
        %v537 = vld [vmem:[#allocation5 + $0x238] sm:$0xff]
        %v538 = vld [vmem:[#allocation5 + $0x240] sm:$0xff]
        %v539 = vld [vmem:[#allocation5 + $0x248] sm:$0xff]
        %v540 = vld [vmem:[#allocation5 + $0x250] sm:$0xff]
        %v541 = vld [vmem:[#allocation5 + $0x258] sm:$0xff]
        %v542 = vld [vmem:[#allocation5 + $0x260] sm:$0xff]
        %v543 = vld [vmem:[#allocation5 + $0x268] sm:$0xff]
        %v544 = vld [vmem:[#allocation5 + $0x270] sm:$0xff]
        %v545 = vld [vmem:[#allocation5 + $0x278] sm:$0xff]
        %v546 = vld [vmem:[#allocation5 + $0x280] sm:$0xff]
        %v547 = vld [vmem:[#allocation5 + $0x288] sm:$0xff]
        %v548 = vld [vmem:[#allocation5 + $0x290] sm:$0xff]
        %v549 = vld [vmem:[#allocation5 + $0x298] sm:$0xff]
        %v550 = vld [vmem:[#allocation5 + $0x2a0] sm:$0xff]
        %v551 = vld [vmem:[#allocation5 + $0x2a8] sm:$0xff]
        %v552 = vld [vmem:[#allocation5 + $0x2b0] sm:$0xff]
        %v553 = vld [vmem:[#allocation5 + $0x2b8] sm:$0xff]
        %v554 = vld [vmem:[#allocation5 + $0x2c0] sm:$0xff]
        %v555 = vld [vmem:[#allocation5 + $0x2c8] sm:$0xff]
        %v556 = vld [vmem:[#allocation5 + $0x2d0] sm:$0xff]
        %v557 = vld [vmem:[#allocation5 + $0x2d8] sm:$0xff]
        %v558 = vld [vmem:[#allocation5 + $0x2e0] sm:$0xff]
        %v559 = vld [vmem:[#allocation5 + $0x2e8] sm:$0xff]
        %v560 = vld [vmem:[#allocation5 + $0x2f0] sm:$0xff]
        %v561 = vld [vmem:[#allocation5 + $0x2f8] sm:$0xff]
        %v658 = vunpack.c.l.b16 %v466
        %v659 = vunpack.c.h.b16 %v466
        %v660 = vunpack.c.l.b16 %v467
        %v661 = vunpack.c.h.b16 %v467
        %v662 = vunpack.c.l.b16 %v468
        %v663 = vunpack.c.h.b16 %v468
        %v664 = vunpack.c.l.b16 %v469
        %v665 = vunpack.c.h.b16 %v469
        %v666 = vunpack.c.l.b16 %v470
        %v667 = vunpack.c.h.b16 %v470
        %v668 = vunpack.c.l.b16 %v471
        %v669 = vunpack.c.h.b16 %v471
        %v670 = vunpack.c.l.b16 %v472
        %v671 = vunpack.c.h.b16 %v472
        %v672 = vunpack.c.l.b16 %v473
        %v673 = vunpack.c.h.b16 %v473
        %v674 = vunpack.c.l.b16 %v474
        %v675 = vunpack.c.h.b16 %v474
        %v676 = vunpack.c.l.b16 %v475
        %v677 = vunpack.c.h.b16 %v475
        %v678 = vunpack.c.l.b16 %v476
        %v679 = vunpack.c.h.b16 %v476
        %v680 = vunpack.c.l.b16 %v477
        %v681 = vunpack.c.h.b16 %v477
        %v682 = vunpack.c.l.b16 %v478
        %v683 = vunpack.c.h.b16 %v478
        %v684 = vunpack.c.l.b16 %v479
        %v685 = vunpack.c.h.b16 %v479
        %v686 = vunpack.c.l.b16 %v480
        %v687 = vunpack.c.h.b16 %v480
        %v688 = vunpack.c.l.b16 %v481
        %v689 = vunpack.c.h.b16 %v481
        %v690 = vunpack.c.l.b16 %v482
        %v691 = vunpack.c.h.b16 %v482
        %v692 = vunpack.c.l.b16 %v483
        %v693 = vunpack.c.h.b16 %v483
        %v694 = vunpack.c.l.b16 %v484
        %v695 = vunpack.c.h.b16 %v484
        %v696 = vunpack.c.l.b16 %v485
        %v697 = vunpack.c.h.b16 %v485
        %v698 = vunpack.c.l.b16 %v486
        %v699 = vunpack.c.h.b16 %v486
        %v700 = vunpack.c.l.b16 %v487
        %v701 = vunpack.c.h.b16 %v487
        %v702 = vunpack.c.l.b16 %v488
        %v703 = vunpack.c.h.b16 %v488
        %v704 = vunpack.c.l.b16 %v489
        %v705 = vunpack.c.h.b16 %v489
        %v706 = vunpack.c.l.b16 %v490
        %v707 = vunpack.c.h.b16 %v490
        %v708 = vunpack.c.l.b16 %v491
        %v709 = vunpack.c.h.b16 %v491
        %v710 = vunpack.c.l.b16 %v492
        %v711 = vunpack.c.h.b16 %v492
        %v712 = vunpack.c.l.b16 %v493
        %v713 = vunpack.c.h.b16 %v493
        %v714 = vunpack.c.l.b16 %v494
        %v715 = vunpack.c.h.b16 %v494
        %v716 = vunpack.c.l.b16 %v495
        %v717 = vunpack.c.h.b16 %v495
        %v718 = vunpack.c.l.b16 %v496
        %v719 = vunpack.c.h.b16 %v496
        %v720 = vunpack.c.l.b16 %v497
        %v721 = vunpack.c.h.b16 %v497
        %v722 = vunpack.c.l.b16 %v498
        %v723 = vunpack.c.h.b16 %v498
        %v724 = vunpack.c.l.b16 %v499
        %v725 = vunpack.c.h.b16 %v499
        %v726 = vunpack.c.l.b16 %v500
        %v727 = vunpack.c.h.b16 %v500
        %v728 = vunpack.c.l.b16 %v501
        %v729 = vunpack.c.h.b16 %v501
        %v730 = vunpack.c.l.b16 %v502
        %v731 = vunpack.c.h.b16 %v502
        %v732 = vunpack.c.l.b16 %v503
        %v733 = vunpack.c.h.b16 %v503
        %v734 = vunpack.c.l.b16 %v504
        %v735 = vunpack.c.h.b16 %v504
        %v736 = vunpack.c.l.b16 %v505
        %v737 = vunpack.c.h.b16 %v505
        %v738 = vunpack.c.l.b16 %v506
        %v739 = vunpack.c.h.b16 %v506
        %v740 = vunpack.c.l.b16 %v507
        %v741 = vunpack.c.h.b16 %v507
        %v742 = vunpack.c.l.b16 %v508
        %v743 = vunpack.c.h.b16 %v508
        %v744 = vunpack.c.l.b16 %v509
        %v745 = vunpack.c.h.b16 %v509
        %v746 = vunpack.c.l.b16 %v510
        %v747 = vunpack.c.h.b16 %v510
        %v748 = vunpack.c.l.b16 %v511
        %v749 = vunpack.c.h.b16 %v511
        %v750 = vunpack.c.l.b16 %v512
        %v751 = vunpack.c.h.b16 %v512
        %v752 = vunpack.c.l.b16 %v513
        %v753 = vunpack.c.h.b16 %v513
        %v754 = vunpack.c.l.b16 %v514
        %v755 = vunpack.c.h.b16 %v514
        %v756 = vunpack.c.l.b16 %v515
        %v757 = vunpack.c.h.b16 %v515
        %v758 = vunpack.c.l.b16 %v516
        %v759 = vunpack.c.h.b16 %v516
        %v760 = vunpack.c.l.b16 %v517
        %v761 = vunpack.c.h.b16 %v517
        %v762 = vunpack.c.l.b16 %v518
        %v763 = vunpack.c.h.b16 %v518
        %v764 = vunpack.c.l.b16 %v519
        %v765 = vunpack.c.h.b16 %v519
        %v766 = vunpack.c.l.b16 %v520
        %v767 = vunpack.c.h.b16 %v520
        %v768 = vunpack.c.l.b16 %v521
        %v769 = vunpack.c.h.b16 %v521
        %v770 = vunpack.c.l.b16 %v522
        %v771 = vunpack.c.h.b16 %v522
        %v772 = vunpack.c.l.b16 %v523
        %v773 = vunpack.c.h.b16 %v523
        %v774 = vunpack.c.l.b16 %v524
        %v775 = vunpack.c.h.b16 %v524
        %v776 = vunpack.c.l.b16 %v525
        %v777 = vunpack.c.h.b16 %v525
        %v778 = vunpack.c.l.b16 %v526
        %v779 = vunpack.c.h.b16 %v526
        %v780 = vunpack.c.l.b16 %v527
        %v781 = vunpack.c.h.b16 %v527
        %v782 = vunpack.c.l.b16 %v528
        %v783 = vunpack.c.h.b16 %v528
        %v784 = vunpack.c.l.b16 %v529
        %v785 = vunpack.c.h.b16 %v529
        %v786 = vunpack.c.l.b16 %v530
        %v787 = vunpack.c.h.b16 %v530
        %v788 = vunpack.c.l.b16 %v531
        %v789 = vunpack.c.h.b16 %v531
        %v790 = vunpack.c.l.b16 %v532
        %v791 = vunpack.c.h.b16 %v532
        %v792 = vunpack.c.l.b16 %v533
        %v793 = vunpack.c.h.b16 %v533
        %v794 = vunpack.c.l.b16 %v534
        %v795 = vunpack.c.h.b16 %v534
        %v796 = vunpack.c.l.b16 %v535
        %v797 = vunpack.c.h.b16 %v535
        %v798 = vunpack.c.l.b16 %v536
        %v799 = vunpack.c.h.b16 %v536
        %v800 = vunpack.c.l.b16 %v537
        %v801 = vunpack.c.h.b16 %v537
        %v802 = vunpack.c.l.b16 %v538
        %v803 = vunpack.c.h.b16 %v538
        %v804 = vunpack.c.l.b16 %v539
        %v805 = vunpack.c.h.b16 %v539
        %v806 = vunpack.c.l.b16 %v540
        %v807 = vunpack.c.h.b16 %v540
        %v808 = vunpack.c.l.b16 %v541
        %v809 = vunpack.c.h.b16 %v541
        %v810 = vunpack.c.l.b16 %v542
        %v811 = vunpack.c.h.b16 %v542
        %v812 = vunpack.c.l.b16 %v543
        %v813 = vunpack.c.h.b16 %v543
        %v814 = vunpack.c.l.b16 %v544
        %v815 = vunpack.c.h.b16 %v544
        %v816 = vunpack.c.l.b16 %v545
        %v817 = vunpack.c.h.b16 %v545
        %v818 = vunpack.c.l.b16 %v546
        %v819 = vunpack.c.h.b16 %v546
        %v820 = vunpack.c.l.b16 %v547
        %v821 = vunpack.c.h.b16 %v547
        %v822 = vunpack.c.l.b16 %v548
        %v823 = vunpack.c.h.b16 %v548
        %v824 = vunpack.c.l.b16 %v549
        %v825 = vunpack.c.h.b16 %v549
        %v826 = vunpack.c.l.b16 %v550
        %v827 = vunpack.c.h.b16 %v550
        %v828 = vunpack.c.l.b16 %v551
        %v829 = vunpack.c.h.b16 %v551
        %v830 = vunpack.c.l.b16 %v552
        %v831 = vunpack.c.h.b16 %v552
        %v832 = vunpack.c.l.b16 %v553
        %v833 = vunpack.c.h.b16 %v553
        %v834 = vunpack.c.l.b16 %v554
        %v835 = vunpack.c.h.b16 %v554
        %v836 = vunpack.c.l.b16 %v555
        %v837 = vunpack.c.h.b16 %v555
        %v838 = vunpack.c.l.b16 %v556
        %v839 = vunpack.c.h.b16 %v556
        %v840 = vunpack.c.l.b16 %v557
        %v841 = vunpack.c.h.b16 %v557
        %v842 = vunpack.c.l.b16 %v558
        %v843 = vunpack.c.h.b16 %v558
        %v844 = vunpack.c.l.b16 %v559
        %v845 = vunpack.c.h.b16 %v559
        %v846 = vunpack.c.l.b16 %v560
        %v847 = vunpack.c.h.b16 %v560
        %v848 = vunpack.c.l.b16 %v561
        %v849 = vunpack.c.h.b16 %v561
        %v850 = vpack.c.b16 %v664, %v658
        %v851 = vpack.c.b16 %v665, %v659
        %v852 = vpack.c.b16 %v666, %v660
        %v853 = vpack.c.b16 %v667, %v661
        %v854 = vpack.c.b16 %v668, %v662
        %v855 = vpack.c.b16 %v669, %v663
        %v856 = vpack.c.b16 %v676, %v670
        %v857 = vpack.c.b16 %v677, %v671
        %v858 = vpack.c.b16 %v678, %v672
        %v859 = vpack.c.b16 %v679, %v673
        %v860 = vpack.c.b16 %v680, %v674
        %v861 = vpack.c.b16 %v681, %v675
        %v862 = vpack.c.b16 %v688, %v682
        %v863 = vpack.c.b16 %v689, %v683
        %v864 = vpack.c.b16 %v690, %v684
        %v865 = vpack.c.b16 %v691, %v685
        %v866 = vpack.c.b16 %v692, %v686
        %v867 = vpack.c.b16 %v693, %v687
        %v868 = vpack.c.b16 %v700, %v694
        %v869 = vpack.c.b16 %v701, %v695
        %v870 = vpack.c.b16 %v702, %v696
        %v871 = vpack.c.b16 %v703, %v697
        %v872 = vpack.c.b16 %v704, %v698
        %v873 = vpack.c.b16 %v705, %v699
        %v874 = vpack.c.b16 %v712, %v706
        %v875 = vpack.c.b16 %v713, %v707
        %v876 = vpack.c.b16 %v714, %v708
        %v877 = vpack.c.b16 %v715, %v709
        %v878 = vpack.c.b16 %v716, %v710
        %v879 = vpack.c.b16 %v717, %v711
        %v880 = vpack.c.b16 %v724, %v718
        %v881 = vpack.c.b16 %v725, %v719
        %v882 = vpack.c.b16 %v726, %v720
        %v883 = vpack.c.b16 %v727, %v721
        %v884 = vpack.c.b16 %v728, %v722
        %v885 = vpack.c.b16 %v729, %v723
        %v886 = vpack.c.b16 %v736, %v730
        %v887 = vpack.c.b16 %v737, %v731
        %v888 = vpack.c.b16 %v738, %v732
        %v889 = vpack.c.b16 %v739, %v733
        %v890 = vpack.c.b16 %v740, %v734
        %v891 = vpack.c.b16 %v741, %v735
        %v892 = vpack.c.b16 %v748, %v742
        %v893 = vpack.c.b16 %v749, %v743
        %v894 = vpack.c.b16 %v750, %v744
        %v895 = vpack.c.b16 %v751, %v745
        %v896 = vpack.c.b16 %v752, %v746
        %v897 = vpack.c.b16 %v753, %v747
        %v898 = vpack.c.b16 %v760, %v754
        %v899 = vpack.c.b16 %v761, %v755
        %v900 = vpack.c.b16 %v762, %v756
        %v901 = vpack.c.b16 %v763, %v757
        %v902 = vpack.c.b16 %v764, %v758
        %v903 = vpack.c.b16 %v765, %v759
        %v904 = vpack.c.b16 %v772, %v766
        %v905 = vpack.c.b16 %v773, %v767
        %v906 = vpack.c.b16 %v774, %v768
        %v907 = vpack.c.b16 %v775, %v769
        %v908 = vpack.c.b16 %v776, %v770
        %v909 = vpack.c.b16 %v777, %v771
        %v910 = vpack.c.b16 %v784, %v778
        %v911 = vpack.c.b16 %v785, %v779
        %v912 = vpack.c.b16 %v786, %v780
        %v913 = vpack.c.b16 %v787, %v781
        %v914 = vpack.c.b16 %v788, %v782
        %v915 = vpack.c.b16 %v789, %v783
        %v916 = vpack.c.b16 %v796, %v790
        %v917 = vpack.c.b16 %v797, %v791
        %v918 = vpack.c.b16 %v798, %v792
        %v919 = vpack.c.b16 %v799, %v793
        %v920 = vpack.c.b16 %v800, %v794
        %v921 = vpack.c.b16 %v801, %v795
        %v922 = vpack.c.b16 %v808, %v802
        %v923 = vpack.c.b16 %v809, %v803
        %v924 = vpack.c.b16 %v810, %v804
        %v925 = vpack.c.b16 %v811, %v805
        %v926 = vpack.c.b16 %v812, %v806
        %v927 = vpack.c.b16 %v813, %v807
        %v928 = vpack.c.b16 %v820, %v814
        %v929 = vpack.c.b16 %v821, %v815
        %v930 = vpack.c.b16 %v822, %v816
        %v931 = vpack.c.b16 %v823, %v817
        %v932 = vpack.c.b16 %v824, %v818
        %v933 = vpack.c.b16 %v825, %v819
        %v934 = vpack.c.b16 %v832, %v826
        %v935 = vpack.c.b16 %v833, %v827
        %v936 = vpack.c.b16 %v834, %v828
        %v937 = vpack.c.b16 %v835, %v829
        %v938 = vpack.c.b16 %v836, %v830
        %v939 = vpack.c.b16 %v837, %v831
        %v940 = vpack.c.b16 %v844, %v838
        %v941 = vpack.c.b16 %v845, %v839
        %v942 = vpack.c.b16 %v846, %v840
        %v943 = vpack.c.b16 %v847, %v841
        %v944 = vpack.c.b16 %v848, %v842
        %v945 = vpack.c.b16 %v849, %v843
        %1042 = vmatprep.subr.bf16.mxu0 %v851
        %1043 = vmatpush1.bf16.msra.mxu0 %v850
        %1044 = vmatprep.subr.bf16.mxu0 %v857
        %1045 = vmatpush1.bf16.msra.mxu0 %v856
        %1046 = vmatprep.subr.bf16.mxu0 %v863
        %1047 = vmatpush1.bf16.msra.mxu0 %v862
        %1048 = vmatprep.subr.bf16.mxu0 %v869
        %1049 = vmatpush1.bf16.msra.mxu0 %v868
        %1050 = vmatprep.subr.bf16.mxu0 %v875
        %1051 = vmatpush1.bf16.msra.mxu0 %v874
        %1052 = vmatprep.subr.bf16.mxu0 %v881
        %1053 = vmatpush1.bf16.msra.mxu0 %v880
        %1054 = vmatprep.subr.bf16.mxu0 %v887
        %1055 = vmatpush1.bf16.msra.mxu0 %v886
        %1056 = vmatprep.subr.bf16.mxu0 %v893
        %1057 = vmatpush1.bf16.msra.mxu0 %v892
        %1058 = vmatprep.subr.bf16.mxu0 %v899
        %1059 = vmatpush1.bf16.msra.mxu0 %v898
        %1060 = vmatprep.subr.bf16.mxu0 %v905
        %1061 = vmatpush1.bf16.msra.mxu0 %v904
        %1062 = vmatprep.subr.bf16.mxu0 %v911
        %1063 = vmatpush1.bf16.msra.mxu0 %v910
        %1064 = vmatprep.subr.bf16.mxu0 %v917
        %1065 = vmatpush1.bf16.msra.mxu0 %v916
        %1066 = vmatprep.subr.bf16.mxu0 %v923
        %1067 = vmatpush1.bf16.msra.mxu0 %v922
        %1068 = vmatprep.subr.bf16.mxu0 %v929
        %1069 = vmatpush1.bf16.msra.mxu0 %v928
        %1070 = vmatprep.subr.bf16.mxu0 %v935
        %1071 = vmatpush1.bf16.msra.mxu0 %v934
        %1072 = vmatprep.subr.bf16.mxu0 %v941
        %1073 = vmatpush1.bf16.msra.mxu0 %v940
        %1074 = vmatprep.mubr.bf16.mxu0 %v465
        %1075 = vmatmul.mubr.bf16.gmra.mrb[0].mxu0 %v464
        %v1076 = vpop.f32.mrb[0].mxu0
        %v1077 = vadd.f32 0.0, %v1076
        %v1078 = vpop.f32.mrb[0].mxu0
        %v1079 = vadd.f32 0.0, %v1078
        %v1080 = vpop.f32.mrb[0].mxu0
        %v1081 = vadd.f32 0.0, %v1080
        %v1082 = vpop.f32.mrb[0].mxu0
        %v1083 = vadd.f32 0.0, %v1082
        %1084 = vdwg.mxu0
        %1085 = vmatprep.subr.bf16.mxu0 %v853
        %1086 = vmatpush1.bf16.msra.mxu0 %v852
        %1087 = vmatprep.subr.bf16.mxu0 %v859
        %1088 = vmatpush1.bf16.msra.mxu0 %v858
        %1089 = vmatprep.subr.bf16.mxu0 %v865
        %1090 = vmatpush1.bf16.msra.mxu0 %v864
        %1091 = vmatprep.subr.bf16.mxu0 %v871
        %1092 = vmatpush1.bf16.msra.mxu0 %v870
        %1093 = vmatprep.subr.bf16.mxu0 %v877
        %1094 = vmatpush1.bf16.msra.mxu0 %v876
        %1095 = vmatprep.subr.bf16.mxu0 %v883
        %1096 = vmatpush1.bf16.msra.mxu0 %v882
        %1097 = vmatprep.subr.bf16.mxu0 %v889
        %1098 = vmatpush1.bf16.msra.mxu0 %v888
        %1099 = vmatprep.subr.bf16.mxu0 %v895
        %1100 = vmatpush1.bf16.msra.mxu0 %v894
        %1101 = vmatprep.subr.bf16.mxu0 %v901
        %1102 = vmatpush1.bf16.msra.mxu0 %v900
        %1103 = vmatprep.subr.bf16.mxu0 %v907
        %1104 = vmatpush1.bf16.msra.mxu0 %v906
        %1105 = vmatprep.subr.bf16.mxu0 %v913
        %1106 = vmatpush1.bf16.msra.mxu0 %v912
        %1107 = vmatprep.subr.bf16.mxu0 %v919
        %1108 = vmatpush1.bf16.msra.mxu0 %v918
        %1109 = vmatprep.subr.bf16.mxu0 %v925
        %1110 = vmatpush1.bf16.msra.mxu0 %v924
        %1111 = vmatprep.subr.bf16.mxu0 %v931
        %1112 = vmatpush1.bf16.msra.mxu0 %v930
        %1113 = vmatprep.subr.bf16.mxu0 %v937
        %1114 = vmatpush1.bf16.msra.mxu0 %v936
        %1115 = vmatprep.subr.bf16.mxu0 %v943
        %1116 = vmatpush1.bf16.msra.mxu0 %v942
        %1117 = vmatprep.mubr.bf16.mxu0 %v465
        %1118 = vmatmul.mubr.bf16.gmra.mrb[0].mxu0 %v464
        %v1119 = vpop.f32.mrb[0].mxu0
        %v1120 = vadd.f32 0.0, %v1119
        %v1121 = vpop.f32.mrb[0].mxu0
        %v1122 = vadd.f32 0.0, %v1121
        %v1123 = vpop.f32.mrb[0].mxu0
        %v1124 = vadd.f32 0.0, %v1123
        %v1125 = vpop.f32.mrb[0].mxu0
        %v1126 = vadd.f32 0.0, %v1125
        %1127 = vdwg.mxu0
        %1128 = vmatprep.subr.bf16.mxu0 %v855
        %1129 = vmatpush1.bf16.msra.mxu0 %v854
        %1130 = vmatprep.subr.bf16.mxu0 %v861
        %1131 = vmatpush1.bf16.msra.mxu0 %v860
        %1132 = vmatprep.subr.bf16.mxu0 %v867
        %1133 = vmatpush1.bf16.msra.mxu0 %v866
        %1134 = vmatprep.subr.bf16.mxu0 %v873
        %1135 = vmatpush1.bf16.msra.mxu0 %v872
        %1136 = vmatprep.subr.bf16.mxu0 %v879
        %1137 = vmatpush1.bf16.msra.mxu0 %v878
        %1138 = vmatprep.subr.bf16.mxu0 %v885
        %1139 = vmatpush1.bf16.msra.mxu0 %v884
        %1140 = vmatprep.subr.bf16.mxu0 %v891
        %1141 = vmatpush1.bf16.msra.mxu0 %v890
        %1142 = vmatprep.subr.bf16.mxu0 %v897
        %1143 = vmatpush1.bf16.msra.mxu0 %v896
        %1144 = vmatprep.subr.bf16.mxu0 %v903
        %1145 = vmatpush1.bf16.msra.mxu0 %v902
        %1146 = vmatprep.subr.bf16.mxu0 %v909
        %1147 = vmatpush1.bf16.msra.mxu0 %v908
        %1148 = vmatprep.subr.bf16.mxu0 %v915
        %1149 = vmatpush1.bf16.msra.mxu0 %v914
        %1150 = vmatprep.subr.bf16.mxu0 %v921
        %1151 = vmatpush1.bf16.msra.mxu0 %v920
        %1152 = vmatprep.subr.bf16.mxu0 %v927
        %1153 = vmatpush1.bf16.msra.mxu0 %v926
        %1154 = vmatprep.subr.bf16.mxu0 %v933
        %1155 = vmatpush1.bf16.msra.mxu0 %v932
        %1156 = vmatprep.subr.bf16.mxu0 %v939
        %1157 = vmatpush1.bf16.msra.mxu0 %v938
        %1158 = vmatprep.subr.bf16.mxu0 %v945
        %1159 = vmatpush1.bf16.msra.mxu0 %v944
        %1160 = vmatprep.mubr.bf16.mxu0 %v465
        %1161 = vmatmul.mubr.bf16.gmra.mrb[0].mxu0 %v464
        %v1162 = vpop.f32.mrb[0].mxu0
        %v1163 = vadd.f32 0.0, %v1162
        %v1164 = vpop.f32.mrb[0].mxu0
        %v1165 = vadd.f32 0.0, %v1164
        %v1166 = vpop.f32.mrb[0].mxu0
        %v1167 = vadd.f32 0.0, %v1166
        %v1168 = vpop.f32.mrb[0].mxu0
        %v1169 = vadd.f32 0.0, %v1168
        %1170 = vdwg.mxu0
        %1171 = vrot.lane.b32.xlu0 %v1077, 127
        %v1172 = vpop.permute.xlu0 %1171
        %1173 = vrot.lane.b32.xlu0 %v1081, 127
        %v1174 = vpop.permute.xlu0 %1173
        %1175 = vrot.lane.b32.xlu0 %v1079, 127
        %v1176 = vpop.permute.xlu0 %1175
        %1177 = vrot.lane.b32.xlu0 %v1083, 127
        %v1178 = vpop.permute.xlu0 %1177
        %1179 = vrot.lane.b32.xlu0 %v1120, 127
        %v1180 = vpop.permute.xlu0 %1179
        %1181 = vrot.lane.b32.xlu0 %v1124, 127
        %v1182 = vpop.permute.xlu0 %1181
        %1183 = vrot.lane.b32.xlu0 %v1122, 127
        %v1184 = vpop.permute.xlu0 %1183
        %1185 = vrot.lane.b32.xlu0 %v1126, 127
        %v1186 = vpop.permute.xlu0 %1185
        %1187 = vrot.lane.b32.xlu0 %v1163, 127
        %v1188 = vpop.permute.xlu0 %1187
        %1189 = vrot.lane.b32.xlu0 %v1167, 127
        %v1190 = vpop.permute.xlu0 %1189
        %1191 = vrot.lane.b32.xlu0 %v1165, 127
        %v1192 = vpop.permute.xlu0 %1191
        %1193 = vrot.lane.b32.xlu0 %v1169, 127
        %v1194 = vpop.permute.xlu0 %1193
        %v1195 = vlaneseq
        %v1196 = vand.u32 %v1195, 127
        %vm1197 = vcmp.lt.s32.totalorder %v1196, 127
        %v1198 = vsel %vm1197, %v1188, %v1192
        %v1199 = vsel %vm1197, %v1190, %v1194
        %v1200 = vsel %vm1197, %v1184, %v1188
        %v1201 = vsel %vm1197, %v1186, %v1190
        %v1202 = vsel %vm1197, %v1180, %v1184
        %v1203 = vsel %vm1197, %v1182, %v1186
        %v1204 = vsel %vm1197, %v1176, %v1180
        %v1205 = vsel %vm1197, %v1178, %v1182
        %v1206 = vsel %vm1197, %v1172, %v1176
        %v1207 = vsel %vm1197, %v1174, %v1178
        %v1208 = vsel %vm1197, %v1192, %v1172
        %v1209 = vsel %vm1197, %v1194, %v1174
        %1210 = vrot.lane.b32.xlu0 %v1077, 1
        %v1211 = vpop.permute.xlu0 %1210
        %1212 = vrot.lane.b32.xlu0 %v1081, 1
        %v1213 = vpop.permute.xlu0 %1212
        %1214 = vrot.lane.b32.xlu0 %v1079, 1
        %v1215 = vpop.permute.xlu0 %1214
        %1216 = vrot.lane.b32.xlu0 %v1083, 1
        %v1217 = vpop.permute.xlu0 %1216
        %1218 = vrot.lane.b32.xlu0 %v1120, 1
        %v1219 = vpop.permute.xlu0 %1218
        %1220 = vrot.lane.b32.xlu0 %v1124, 1
        %v1221 = vpop.permute.xlu0 %1220
        %1222 = vrot.lane.b32.xlu0 %v1122, 1
        %v1223 = vpop.permute.xlu0 %1222
        %1224 = vrot.lane.b32.xlu0 %v1126, 1
        %v1225 = vpop.permute.xlu0 %1224
        %1226 = vrot.lane.b32.xlu0 %v1163, 1
        %v1227 = vpop.permute.xlu0 %1226
        %1228 = vrot.lane.b32.xlu0 %v1167, 1
        %v1229 = vpop.permute.xlu0 %1228
        %1230 = vrot.lane.b32.xlu0 %v1165, 1
        %v1231 = vpop.permute.xlu0 %1230
        %1232 = vrot.lane.b32.xlu0 %v1169, 1
        %v1233 = vpop.permute.xlu0 %1232
        %vm1234 = vcmp.lt.s32.totalorder %v1196, 1
        %v1235 = vsel %vm1234, %v1227, %v1231
        %v1236 = vsel %vm1234, %v1229, %v1233
        %v1237 = vsel %vm1234, %v1223, %v1227
        %v1238 = vsel %vm1234, %v1225, %v1229
        %v1239 = vsel %vm1234, %v1219, %v1223
        %v1240 = vsel %vm1234, %v1221, %v1225
        %v1241 = vsel %vm1234, %v1215, %v1219
        %v1242 = vsel %vm1234, %v1217, %v1221
        %v1243 = vsel %vm1234, %v1211, %v1215
        %v1244 = vsel %vm1234, %v1213, %v1217
        %v1245 = vsel %vm1234, %v1231, %v1211
        %v1246 = vsel %vm1234, %v1233, %v1213
        %v1247 = vld [vmem:[%s356] sm:$0xff]
        %v1248 = vld [vmem:[%s356 + $0x8] sm:$0xff]
        %v1249 = vld [vmem:[%s356 + $0x10] sm:$0xff]
        %v1250 = vld [vmem:[%s356 + $0x18] sm:$0xff]
        %v1251 = vld [vmem:[%s356 + $0x20] sm:$0xff]
        %v1252 = vld [vmem:[%s356 + $0x28] sm:$0xff]
        %v1253 = vld [vmem:[%s356 + $0x30] sm:$0xff]
        %v1254 = vld [vmem:[%s356 + $0x38] sm:$0xff]
        %v1255 = vld [vmem:[%s356 + $0x40] sm:$0xff]
        %v1256 = vld [vmem:[%s356 + $0x48] sm:$0xff]
        %v1257 = vld [vmem:[%s356 + $0x50] sm:$0xff]
        %v1258 = vld [vmem:[%s356 + $0x58] sm:$0xff]
        %v1259 = vmul.f32 %v1077, %v1247
        %v1260 = vmul.f32 %v1079, %v1248
        %v1261 = vmul.f32 %v1120, %v1249
        %v1262 = vmul.f32 %v1122, %v1250
        %v1263 = vmul.f32 %v1163, %v1251
        %v1264 = vmul.f32 %v1165, %v1252
        %v1265 = vmul.f32 %v1081, %v1253
        %v1266 = vmul.f32 %v1083, %v1254
        %v1267 = vmul.f32 %v1124, %v1255
        %v1268 = vmul.f32 %v1126, %v1256
        %v1269 = vmul.f32 %v1167, %v1257
        %v1270 = vmul.f32 %v1169, %v1258
        %v1271 = vld [vmem:[%s365] sm:$0xff]
        %v1272 = vld [vmem:[%s365 + $0x8] sm:$0xff]
        %v1273 = vld [vmem:[%s365 + $0x10] sm:$0xff]
        %v1274 = vld [vmem:[%s365 + $0x18] sm:$0xff]
        %v1275 = vld [vmem:[%s365 + $0x20] sm:$0xff]
        %v1276 = vld [vmem:[%s365 + $0x28] sm:$0xff]
        %v1277 = vld [vmem:[%s365 + $0x30] sm:$0xff]
        %v1278 = vld [vmem:[%s365 + $0x38] sm:$0xff]
        %v1279 = vld [vmem:[%s365 + $0x40] sm:$0xff]
        %v1280 = vld [vmem:[%s365 + $0x48] sm:$0xff]
        %v1281 = vld [vmem:[%s365 + $0x50] sm:$0xff]
        %v1282 = vld [vmem:[%s365 + $0x58] sm:$0xff]
        %v1283 = vmul.f32 %v1206, %v1271
        %v1284 = vmul.f32 %v1204, %v1272
        %v1285 = vmul.f32 %v1202, %v1273
        %v1286 = vmul.f32 %v1200, %v1274
        %v1287 = vmul.f32 %v1198, %v1275
        %v1288 = vmul.f32 %v1208, %v1276
        %v1289 = vmul.f32 %v1207, %v1277
        %v1290 = vmul.f32 %v1205, %v1278
        %v1291 = vmul.f32 %v1203, %v1279
        %v1292 = vmul.f32 %v1201, %v1280
        %v1293 = vmul.f32 %v1199, %v1281
        %v1294 = vmul.f32 %v1209, %v1282
        %v1295 = vadd.f32 %v1259, %v1283
        %v1296 = vadd.f32 %v1260, %v1284
        %v1297 = vadd.f32 %v1261, %v1285
        %v1298 = vadd.f32 %v1262, %v1286
        %v1299 = vadd.f32 %v1263, %v1287
        %v1300 = vadd.f32 %v1264, %v1288
        %v1301 = vadd.f32 %v1265, %v1289
        %v1302 = vadd.f32 %v1266, %v1290
        %v1303 = vadd.f32 %v1267, %v1291
        %v1304 = vadd.f32 %v1268, %v1292
        %v1305 = vadd.f32 %v1269, %v1293
        %v1306 = vadd.f32 %v1270, %v1294
        %v1307 = vld [vmem:[%s374] sm:$0xff]
        %v1308 = vld [vmem:[%s374 + $0x8] sm:$0xff]
        %v1309 = vld [vmem:[%s374 + $0x10] sm:$0xff]
        %v1310 = vld [vmem:[%s374 + $0x18] sm:$0xff]
        %v1311 = vld [vmem:[%s374 + $0x20] sm:$0xff]
        %v1312 = vld [vmem:[%s374 + $0x28] sm:$0xff]
        %v1313 = vld [vmem:[%s374 + $0x30] sm:$0xff]
        %v1314 = vld [vmem:[%s374 + $0x38] sm:$0xff]
        %v1315 = vld [vmem:[%s374 + $0x40] sm:$0xff]
        %v1316 = vld [vmem:[%s374 + $0x48] sm:$0xff]
        %v1317 = vld [vmem:[%s374 + $0x50] sm:$0xff]
        %v1318 = vld [vmem:[%s374 + $0x58] sm:$0xff]
        %v1319 = vmul.f32 %v1245, %v1307
        %v1320 = vmul.f32 %v1243, %v1308
        %v1321 = vmul.f32 %v1241, %v1309
        %v1322 = vmul.f32 %v1239, %v1310
        %v1323 = vmul.f32 %v1237, %v1311
        %v1324 = vmul.f32 %v1235, %v1312
        %v1325 = vmul.f32 %v1246, %v1313
        %v1326 = vmul.f32 %v1244, %v1314
        %v1327 = vmul.f32 %v1242, %v1315
        %v1328 = vmul.f32 %v1240, %v1316
        %v1329 = vmul.f32 %v1238, %v1317
        %v1330 = vmul.f32 %v1236, %v1318
        %v1331 = vadd.f32 %v1295, %v1319
        %v1332 = vadd.f32 %v1296, %v1320
        %v1333 = vadd.f32 %v1297, %v1321
        %v1334 = vadd.f32 %v1298, %v1322
        %v1335 = vadd.f32 %v1299, %v1323
        %v1336 = vadd.f32 %v1300, %v1324
        %v1337 = vadd.f32 %v1301, %v1325
        %v1338 = vadd.f32 %v1302, %v1326
        %v1339 = vadd.f32 %v1303, %v1327
        %v1340 = vadd.f32 %v1304, %v1328
        %v1341 = vadd.f32 %v1305, %v1329
        %v1342 = vadd.f32 %v1306, %v1330
        %v1343 = vpack.c.bf16 %v1337, %v1331
        %v1344 = vpack.c.bf16 %v1338, %v1332
        %v1345 = vpack.c.bf16 %v1339, %v1333
        %v1346 = vpack.c.bf16 %v1340, %v1334
        %v1347 = vpack.c.bf16 %v1341, %v1335
        %v1348 = vpack.c.bf16 %v1342, %v1336
        %v1355 = vunpack.c.l.b16 %v1343
        %v1356 = vunpack.c.l.b16 %v1344
        %v1357 = vunpack.c.l.b16 %v1345
        %v1358 = vunpack.c.l.b16 %v1346
        %v1359 = vunpack.c.l.b16 %v1347
        %v1360 = vunpack.c.l.b16 %v1348
        %v1361 = vunpack.c.h.b16 %v1343
        %v1362 = vunpack.c.h.b16 %v1344
        %v1363 = vunpack.c.h.b16 %v1345
        %v1364 = vunpack.c.h.b16 %v1346
        %v1365 = vunpack.c.h.b16 %v1347
        %v1366 = vunpack.c.h.b16 %v1348
        %v1367 = vpack.c.b16 %v1356, %v1355
        %v1368 = vpack.c.b16 %v1358, %v1357
        %v1369 = vpack.c.b16 %v1360, %v1359
        %v1370 = vpack.c.b16 %v1362, %v1361
        %v1371 = vpack.c.b16 %v1364, %v1363
        %v1372 = vpack.c.b16 %v1366, %v1365
        %1379 = vst [vmem:[%s417] sm:$0xff] %v1367
        %1380 = vst [vmem:[%s417 + $0x8] sm:$0xff] %v1368
        %1381 = vst [vmem:[%s417 + $0x10] sm:$0xff] %v1369
        %1382 = vst [vmem:[%s417 + $0x18] sm:$0xff] %v1370
        %1383 = vst [vmem:[%s417 + $0x20] sm:$0xff] %v1371
        %1384 = vst [vmem:[%s417 + $0x28] sm:$0xff] %v1372
        %s1385 = sand.u32 %s194, 1
        %s1386 = scalar_lea.sflag [#allocation4], %s1385
        %s1387 = sand.u32 %s194, 1
        %s1388 = smul.addr %s1387, 48
        %s1389 = scalar_lea.vmem [#allocation10], %s1388
        // Predicated region
        $region65: #{tpu_custom_call.1} parent=43 // pred_check
          %p1390 = pneg %p204
        $region66: #{tpu_custom_call.1} parent=43 // pred_check_branch
          %1392 = sbr.rel (%p1390) target = $region68
        $region67: #{tpu_custom_call.1} parent=43 // pred_region
          %s1393 = smul.u32 2, %s29
          %s1395 = ssub.s32 768, 768
          %1396 = vsyncadd %s1386, %s1395
          %s1397 = smul.addr %s1393, 6
          %s1398 = smul.addr %s28, 24
          %s1399 = sadd.s32 %s1397, %s1398
          %s1400 = smul.addr %s1399, 64
          %s1401 = scalar_lea.hbm %s6, %s1400
          %s1402 = sshll.u32 %s1389, 4
          %s1403 = int_to_ptr.vmem [resolvable:$true] %s1402
          %1408 = dma.vmem_to_hbm [thread:$0]  %s1403, 768, %s1401, %s1386, 384, 384, 24
        $region68: #{tpu_custom_call.1} parent=43 // pred_fallthru
          _
      $region44: #{tpu_custom_call.1} parent=5 // pred_fallthru
        _
      %p1409 = scmp.le.s32.totalorder 2, %s19
      // Predicated region
      $region69: #{tpu_custom_call.1} parent=5 // pred_check
        %p1410 = pneg %p1409
      $region70: #{tpu_custom_call.1} parent=5 // pred_check_branch
        %1412 = sbr.rel (%p1410) target = $region72
      $region71: #{tpu_custom_call.1} parent=5 // pred_region
        %s1413 = ssub.s32 %s19, 2
        // Predicated region
        $region73: #{tpu_custom_call.1} parent=71 // pred_check
          %p1414 = pneg %p210
        $region74: #{tpu_custom_call.1} parent=71 // pred_check_branch
          %1416 = sbr.rel (%p1414) target = $region76
        $region75: #{tpu_custom_call.1} parent=71 // pred_region
          %s1417 = sand.u32 %s195, 1
          %s1418 = scalar_lea.sflag [#allocation4], %s1417
          %s1419 = sand.u32 %s195, 1
          %s1420 = smul.addr %s1419, 48
          %s1421 = scalar_lea.vmem [#allocation10], %s1420
          %1422 = dma.done %s1418, 768
        $region76: #{tpu_custom_call.1} parent=71 // pred_fallthru
          _
      $region72: #{tpu_custom_call.1} parent=5 // pred_fallthru
        _
    $region6: #{tpu_custom_call.1} parent=1 // loop_footer
      %s23 = sadd.s32 1, %s19
    $region7: #{tpu_custom_call.1} parent=1 // loop_footer_branch
      %18 = sbr.rel target = $region3
    $region8: #{tpu_custom_call.1} parent=1 // loop_exit
      _
    %1423 = vsyncpa [#allocation3], 1
    %s1424 = scalar_lea.sflag [#allocation3], 1
    %1425 = vsyncpa %s1424, 1
    %1426 = vsyncpa [#allocation6], 1
    %1427 = vsyncpa [#allocation4], 1
    %s1428 = scalar_lea.sflag [#allocation4], 1
    %1429 = vsyncpa %s1428, 1

</llo_original>
